<compile_context>
chip_gen: v6e
topology: v6e:2x2x1
jax: 0.10.0
libtpu: 0.0.40
codegen_flags: <defaults>
</compile_context>

<pallas_src>
import functools
import math

import jax
import jax.numpy as jnp
from jax.experimental import pallas as pl
from jax.experimental.pallas import tpu as pltpu


def _forward_kernel(xm_ref, w1_ref, wqkv_ref, wo_ref, w2_ref, we_ref,
                    packh_ref, packe_ref, out_ref, *, num_heads, hidden_dim):
    def matmul_t(a, w):
        # a: [m, k], w: [n, k]  ->  [m, n]   (y = a @ w.T, PyTorch nn.Linear convention)
        return jax.lax.dot_general(a, w, (((1,), (1,)), ((), ())),
                                   preferred_element_type=jnp.float32)

    H = hidden_dim
    nh = num_heads
    hd = H // nh

    xm = xm_ref[...]                           # [B, N]  (seq-mean, computed in wrapper)

    ph = packh_ref[...]                        # [8, H]  packed H-wide vectors
    b1, bq, bk, bv = ph[0:1], ph[1:2], ph[2:3], ph[3:4]
    bo, ln_g, ln_b, b2 = ph[4:5], ph[5:6], ph[6:7], ph[7:8]
    pe = packe_ref[...]                        # [2, E_pad] packed edge-width vectors
    be, off_diag = pe[0:1], pe[1:2]

    # feature_extractor: Linear(2N -> H) on concat([x_mean, zeros]); the all-zero
    # interventions half contributes nothing, so only the x_mean half is computed.
    h = jnp.maximum(matmul_t(xm, w1_ref[...]) + b1, 0.0)                  # [B, H]
    # node_embeddings branch is dead for input_dim > 1 — skipped.

    # --- AttentionBlock: MHA over [B, H] treated as an unbatched length-B sequence ---
    qkv = matmul_t(h, wqkv_ref[...])                                      # [B, 3H] fused
    q = qkv[:, 0:H] + bq
    k = qkv[:, H:2 * H] + bk
    v = qkv[:, 2 * H:3 * H] + bv

    # Heads on a leading (untiled) axis -> batched MXU ops instead of a per-head loop.
    q3 = jnp.concatenate([q[None, :, i * hd:(i + 1) * hd] for i in range(nh)], axis=0)
    k3 = jnp.concatenate([k[None, :, i * hd:(i + 1) * hd] for i in range(nh)], axis=0)
    v3 = jnp.concatenate([v[None, :, i * hd:(i + 1) * hd] for i in range(nh)], axis=0)

    scale = 1.0 / math.sqrt(hd)
    scores = jnp.einsum('hqd,hkd->hqk', q3, k3,
                        preferred_element_type=jnp.float32) * scale       # [nh, B, B]
    scores = scores - jnp.max(scores, axis=-1, keepdims=True)
    p = jnp.exp(scores)
    p = p * pl.reciprocal(jnp.sum(p, axis=-1, keepdims=True), approx=True)
    o3 = jnp.einsum('hqk,hkd->hqd', p, v3,
                    preferred_element_type=jnp.float32)                   # [nh, B, hd]

    # out_proj(concat(heads)) with a single full-width matmul (attn dropout = identity)
    attn = jnp.concatenate([o3[i] for i in range(nh)], axis=-1)           # [B, H]
    attn_out = matmul_t(attn, wo_ref[...]) + bo

    # residual + LayerNorm(eps=1e-5)
    y = h + attn_out
    mu = jnp.mean(y, axis=-1, keepdims=True)
    var = jnp.mean(jnp.square(y - mu), axis=-1, keepdims=True)
    y = (y - mu) * jax.lax.rsqrt(var + 1e-5) * ln_g + ln_b

    # encoder tail: Linear(H, H) + ReLU  (Dropout = identity)
    h2 = jnp.maximum(matmul_t(y, w2_ref[...]) + b2, 0.0)

    # edge_predictor (lane-padded to E_pad): sigmoid, zero diagonal via precomputed mask
    logits = matmul_t(h2, we_ref[...]) + be                               # [B, E_pad]
    out_ref[...] = jax.nn.sigmoid(logits) * off_diag
    # TODO(synk): uncertainty = 4*p*(1-p) is only stored on self / returned when
    # return_uncertainty=True; the default forward returns adj only, so it is not emitted.


def init_params(key, input_dim, hidden_dim):
    """Deterministic Xavier-uniform init matching the module's parameter shapes."""
    def xavier(k, shape):
        fan_out, fan_in = shape
        limit = math.sqrt(6.0 / (fan_in + fan_out))
        return jax.random.uniform(k, shape, jnp.float32, -limit, limit)

    N, H = input_dim, hidden_dim
    keys = jax.random.split(key, 7)
    return dict(
        w1=xavier(keys[0], (H, 2 * N)), b1=jnp.zeros((1, H), jnp.float32),
        wq=xavier(keys[1], (H, H)), bq=jnp.zeros((1, H), jnp.float32),
        wk=xavier(keys[2], (H, H)), bk=jnp.zeros((1, H), jnp.float32),
        wv=xavier(keys[3], (H, H)), bv=jnp.zeros((1, H), jnp.float32),
        wo=xavier(keys[4], (H, H)), bo=jnp.zeros((1, H), jnp.float32),
        ln_g=jnp.ones((1, H), jnp.float32), ln_b=jnp.zeros((1, H), jnp.float32),
        w2=xavier(keys[5], (H, H)), b2=jnp.zeros((1, H), jnp.float32),
        we=xavier(keys[6], (N * N, H)), be=jnp.zeros((1, N * N), jnp.float32),
    )


def pack_params(params, num_nodes):
    """One-time packing: fused QKV weight, dropped dead intervention weight half,
    two slabs holding all small vectors, edge weight/bias/mask lane-padded to x128."""
    N = num_nodes
    H = params["wo"].shape[0]
    E = N * N
    E_pad = ((E + 127) // 128) * 128
    pad_e = E_pad - E

    idx = jnp.arange(E, dtype=jnp.int32)
    off_diag = (idx // N != idx % N).astype(jnp.float32)[None, :]          # [1, E]

    return dict(
        w1=params["w1"][:, :N],                       # zero-intervention half is dead
        wqkv=jnp.concatenate([params["wq"], params["wk"], params["wv"]], axis=0),
        wo=params["wo"],
        w2=params["w2"],
        we=jnp.pad(params["we"], ((0, pad_e), (0, 0))),                    # [E_pad, H]
        pack_h=jnp.concatenate(
            [params["b1"], params["bq"], params["bk"], params["bv"],
             params["bo"], params["ln_g"], params["ln_b"], params["b2"]], axis=0),  # [8, H]
        pack_e=jnp.concatenate(
            [jnp.pad(params["be"], ((0, 0), (0, pad_e))),
             jnp.pad(off_diag, ((0, 0), (0, pad_e)))], axis=0),            # [2, E_pad]
    )


@functools.partial(jax.jit, static_argnames=("num_heads",))
def simplified_causal_discovery_forward(x, packed, num_heads=4):
    """x: [B, S, N] float32, packed: pack_params(...) -> adjacency probs [B, N, N]."""
    B, S, N = x.shape
    H = packed["wo"].shape[0]
    E = N * N
    E_pad = packed["we"].shape[0]
    assert H % num_heads == 0
    # input_dim == 1 would activate the node_embeddings add-back, which is not implemented.
    assert N > 1

    x_mean = jnp.mean(x, axis=1)                      # only the seq-mean is ever used

    vmem = pl.BlockSpec(memory_space=pltpu.MemorySpace.VMEM)
    args = (x_mean, packed["w1"], packed["wqkv"], packed["wo"], packed["w2"],
            packed["we"], packed["pack_h"], packed["pack_e"])
    out_flat = pl.pallas_call(
        functools.partial(_forward_kernel, num_heads=num_heads, hidden_dim=H),
        out_shape=jax.ShapeDtypeStruct((B, E_pad), jnp.float32),
        in_specs=[vmem] * len(args),
        out_specs=vmem,
    )(*args)
    return out_flat[:, :E].reshape(B, N, N)


if __name__ == "__main__":
    key = jax.random.PRNGKey(0)
    kx, kp = jax.random.split(key)

    # small shapes: batch=4, seq=8, nodes(input_dim)=8, hidden=32, heads=4
    B, S, N, H = 4, 8, 8, 32
    x = jax.random.normal(kx, (B, S, N), jnp.float32)
    params = init_params(kp, input_dim=N, hidden_dim=H)
    packed = pack_params(params, num_nodes=N)

    out = simplified_causal_discovery_forward(x, packed, num_heads=4)
    jax.block_until_ready(out)

    assert out.shape == (B, N, N)
    assert bool(jnp.all(jnp.isfinite(out)))
    # diagonal must be exactly zero, all probs in [0, 1]
    diag = jnp.diagonal(out, axis1=1, axis2=2)
    assert bool(jnp.all(diag == 0.0))
    assert bool(jnp.all((out >= 0.0) & (out <= 1.0)))
    print("KERNEL_OK")
</pallas_src>

<mosaic_0001>
module attributes {stable_mosaic.version = 11 : i64} {
  func.func @_forward_kernel(%arg0: memref<4x8xf32, #tpu.memory_space<vmem>>, %arg1: memref<32x8xf32, #tpu.memory_space<vmem>>, %arg2: memref<96x32xf32, #tpu.memory_space<vmem>>, %arg3: memref<32x32xf32, #tpu.memory_space<vmem>>, %arg4: memref<32x32xf32, #tpu.memory_space<vmem>>, %arg5: memref<128x32xf32, #tpu.memory_space<vmem>>, %arg6: memref<8x32xf32, #tpu.memory_space<vmem>>, %arg7: memref<2x128xf32, #tpu.memory_space<vmem>>, %arg8: memref<4x128xf32, #tpu.memory_space<vmem>>) attributes {dimension_semantics = [], scalar_prefetch = 0 : i64, scratch_operands = 0 : i64, tpu.core_type = #tpu.core_type<tc>} {
    %c0 = arith.constant 0 : index
    %c0_0 = arith.constant 0 : index
    %0 = vector.load %arg0[%c0, %c0_0] : memref<4x8xf32, #tpu.memory_space<vmem>>, vector<4x8xf32>
    %c0_1 = arith.constant 0 : index
    %c0_2 = arith.constant 0 : index
    %1 = vector.load %arg6[%c0_1, %c0_2] : memref<8x32xf32, #tpu.memory_space<vmem>>, vector<8x32xf32>
    %2 = vector.extract_strided_slice %1 {offsets = [0, 0], sizes = [1, 32], strides = [1, 1]} : vector<8x32xf32> to vector<1x32xf32>
    %3 = vector.extract_strided_slice %1 {offsets = [1, 0], sizes = [1, 32], strides = [1, 1]} : vector<8x32xf32> to vector<1x32xf32>
    %4 = vector.extract_strided_slice %1 {offsets = [2, 0], sizes = [1, 32], strides = [1, 1]} : vector<8x32xf32> to vector<1x32xf32>
    %5 = vector.extract_strided_slice %1 {offsets = [3, 0], sizes = [1, 32], strides = [1, 1]} : vector<8x32xf32> to vector<1x32xf32>
    %6 = vector.extract_strided_slice %1 {offsets = [4, 0], sizes = [1, 32], strides = [1, 1]} : vector<8x32xf32> to vector<1x32xf32>
    %7 = vector.extract_strided_slice %1 {offsets = [5, 0], sizes = [1, 32], strides = [1, 1]} : vector<8x32xf32> to vector<1x32xf32>
    %8 = vector.extract_strided_slice %1 {offsets = [6, 0], sizes = [1, 32], strides = [1, 1]} : vector<8x32xf32> to vector<1x32xf32>
    %9 = vector.extract_strided_slice %1 {offsets = [7, 0], sizes = [1, 32], strides = [1, 1]} : vector<8x32xf32> to vector<1x32xf32>
    %c0_3 = arith.constant 0 : index
    %c0_4 = arith.constant 0 : index
    %10 = vector.load %arg7[%c0_3, %c0_4] : memref<2x128xf32, #tpu.memory_space<vmem>>, vector<2x128xf32>
    %11 = vector.extract_strided_slice %10 {offsets = [0, 0], sizes = [1, 128], strides = [1, 1]} : vector<2x128xf32> to vector<1x128xf32>
    %12 = vector.extract_strided_slice %10 {offsets = [1, 0], sizes = [1, 128], strides = [1, 1]} : vector<2x128xf32> to vector<1x128xf32>
    %c0_5 = arith.constant 0 : index
    %c0_6 = arith.constant 0 : index
    %13 = vector.load %arg1[%c0_5, %c0_6] : memref<32x8xf32, #tpu.memory_space<vmem>>, vector<32x8xf32>
    %cst = arith.constant dense<0.000000e+00> : vector<4x32xf32>
    %14 = tpu.matmul %0, %13, %cst {dimension_numbers = #tpu.dot_dimension_numbers<[1], [1], [0], [0], [0, 0, 1, 0], [], []>} : vector<4x8xf32>, vector<32x8xf32>, vector<4x32xf32> -> vector<4x32xf32>
    %15 = vector.broadcast %2 : vector<1x32xf32> to vector<4x32xf32>
    %16 = arith.addf %14, %15 : vector<4x32xf32>
    %cst_7 = arith.constant 0.000000e+00 : f32
    %17 = vector.broadcast %cst_7 : f32 to vector<4x32xf32>
    %18 = arith.maximumf %16, %17 : vector<4x32xf32>
    %c0_8 = arith.constant 0 : index
    %c0_9 = arith.constant 0 : index
    %19 = vector.load %arg2[%c0_8, %c0_9] : memref<96x32xf32, #tpu.memory_space<vmem>>, vector<96x32xf32>
    %cst_10 = arith.constant dense<0.000000e+00> : vector<4x96xf32>
    %20 = tpu.matmul %18, %19, %cst_10 {dimension_numbers = #tpu.dot_dimension_numbers<[1], [1], [0], [0], [0, 0, 1, 0], [], []>} : vector<4x32xf32>, vector<96x32xf32>, vector<4x96xf32> -> vector<4x96xf32>
    %21 = vector.extract_strided_slice %20 {offsets = [0, 0], sizes = [4, 32], strides = [1, 1]} : vector<4x96xf32> to vector<4x32xf32>
    %22 = vector.broadcast %3 : vector<1x32xf32> to vector<4x32xf32>
    %23 = arith.addf %21, %22 : vector<4x32xf32>
    %24 = vector.extract_strided_slice %20 {offsets = [0, 32], sizes = [4, 32], strides = [1, 1]} : vector<4x96xf32> to vector<4x32xf32>
    %25 = vector.broadcast %4 : vector<1x32xf32> to vector<4x32xf32>
    %26 = arith.addf %24, %25 : vector<4x32xf32>
    %27 = vector.extract_strided_slice %20 {offsets = [0, 64], sizes = [4, 32], strides = [1, 1]} : vector<4x96xf32> to vector<4x32xf32>
    %28 = vector.broadcast %5 : vector<1x32xf32> to vector<4x32xf32>
    %29 = arith.addf %27, %28 : vector<4x32xf32>
    %30 = vector.extract_strided_slice %23 {offsets = [0, 0], sizes = [4, 8], strides = [1, 1]} : vector<4x32xf32> to vector<4x8xf32>
    %31 = vector.shape_cast %30 : vector<4x8xf32> to vector<1x4x8xf32>
    %32 = vector.extract_strided_slice %23 {offsets = [0, 8], sizes = [4, 8], strides = [1, 1]} : vector<4x32xf32> to vector<4x8xf32>
    %33 = vector.shape_cast %32 : vector<4x8xf32> to vector<1x4x8xf32>
    %34 = vector.extract_strided_slice %23 {offsets = [0, 16], sizes = [4, 8], strides = [1, 1]} : vector<4x32xf32> to vector<4x8xf32>
    %35 = vector.shape_cast %34 : vector<4x8xf32> to vector<1x4x8xf32>
    %36 = vector.extract_strided_slice %23 {offsets = [0, 24], sizes = [4, 8], strides = [1, 1]} : vector<4x32xf32> to vector<4x8xf32>
    %37 = vector.shape_cast %36 : vector<4x8xf32> to vector<1x4x8xf32>
    %38 = tpu.concatenate %31, %33, %35, %37 in 0 : vector<1x4x8xf32>, vector<1x4x8xf32>, vector<1x4x8xf32>, vector<1x4x8xf32> -> vector<4x4x8xf32>
    %39 = vector.extract_strided_slice %26 {offsets = [0, 0], sizes = [4, 8], strides = [1, 1]} : vector<4x32xf32> to vector<4x8xf32>
    %40 = vector.shape_cast %39 : vector<4x8xf32> to vector<1x4x8xf32>
    %41 = vector.extract_strided_slice %26 {offsets = [0, 8], sizes = [4, 8], strides = [1, 1]} : vector<4x32xf32> to vector<4x8xf32>
    %42 = vector.shape_cast %41 : vector<4x8xf32> to vector<1x4x8xf32>
    %43 = vector.extract_strided_slice %26 {offsets = [0, 16], sizes = [4, 8], strides = [1, 1]} : vector<4x32xf32> to vector<4x8xf32>
    %44 = vector.shape_cast %43 : vector<4x8xf32> to vector<1x4x8xf32>
    %45 = vector.extract_strided_slice %26 {offsets = [0, 24], sizes = [4, 8], strides = [1, 1]} : vector<4x32xf32> to vector<4x8xf32>
    %46 = vector.shape_cast %45 : vector<4x8xf32> to vector<1x4x8xf32>
    %47 = tpu.concatenate %40, %42, %44, %46 in 0 : vector<1x4x8xf32>, vector<1x4x8xf32>, vector<1x4x8xf32>, vector<1x4x8xf32> -> vector<4x4x8xf32>
    %48 = vector.extract_strided_slice %29 {offsets = [0, 0], sizes = [4, 8], strides = [1, 1]} : vector<4x32xf32> to vector<4x8xf32>
    %49 = vector.shape_cast %48 : vector<4x8xf32> to vector<1x4x8xf32>
    %50 = vector.extract_strided_slice %29 {offsets = [0, 8], sizes = [4, 8], strides = [1, 1]} : vector<4x32xf32> to vector<4x8xf32>
    %51 = vector.shape_cast %50 : vector<4x8xf32> to vector<1x4x8xf32>
    %52 = vector.extract_strided_slice %29 {offsets = [0, 16], sizes = [4, 8], strides = [1, 1]} : vector<4x32xf32> to vector<4x8xf32>
    %53 = vector.shape_cast %52 : vector<4x8xf32> to vector<1x4x8xf32>
    %54 = vector.extract_strided_slice %29 {offsets = [0, 24], sizes = [4, 8], strides = [1, 1]} : vector<4x32xf32> to vector<4x8xf32>
    %55 = vector.shape_cast %54 : vector<4x8xf32> to vector<1x4x8xf32>
    %56 = tpu.concatenate %49, %51, %53, %55 in 0 : vector<1x4x8xf32>, vector<1x4x8xf32>, vector<1x4x8xf32>, vector<1x4x8xf32> -> vector<4x4x8xf32>
    "tpu.trace_start"() <{level = 10 : i32, message = "hqd,hkd->hqk"}> : () -> ()
    %cst_11 = arith.constant dense<0.000000e+00> : vector<4x4x4xf32>
    %57 = tpu.matmul %38, %47, %cst_11 {dimension_numbers = #tpu.dot_dimension_numbers<[2], [2], [1], [1], [0, 0, 0, 1, 1, 1], [0], [0]>} : vector<4x4x8xf32>, vector<4x4x8xf32>, vector<4x4x4xf32> -> vector<4x4x4xf32>
    "tpu.trace_stop"() : () -> ()
    %cst_12 = arith.constant 0.353553385 : f32
    %58 = vector.broadcast %cst_12 : f32 to vector<4x4x4xf32>
    %59 = arith.mulf %57, %58 : vector<4x4x4xf32>
    %cst_13 = arith.constant dense<0xFF800000> : vector<4x4xf32>
    %60 = vector.multi_reduction <maximumf>, %59, %cst_13 [2] : vector<4x4x4xf32> to vector<4x4xf32>
    %61 = vector.shape_cast %60 : vector<4x4xf32> to vector<4x4x1xf32>
    %62 = vector.broadcast %61 : vector<4x4x1xf32> to vector<4x4x4xf32>
    %63 = arith.subf %59, %62 : vector<4x4x4xf32>
    %64 = math.exp %63 : vector<4x4x4xf32>
    %cst_14 = arith.constant dense<0.000000e+00> : vector<4x4xf32>
    %65 = vector.multi_reduction <add>, %64, %cst_14 [2] : vector<4x4x4xf32> to vector<4x4xf32>
    %66 = vector.shape_cast %65 : vector<4x4xf32> to vector<4x4x1xf32>
    %67 = tpu.reciprocal %66 {approx = true} : vector<4x4x1xf32> -> vector<4x4x1xf32>
    %68 = vector.broadcast %67 : vector<4x4x1xf32> to vector<4x4x4xf32>
    %69 = arith.mulf %64, %68 : vector<4x4x4xf32>
    "tpu.trace_start"() <{level = 10 : i32, message = "hqk,hkd->hqd"}> : () -> ()
    %cst_15 = arith.constant dense<0.000000e+00> : vector<4x4x8xf32>
    %70 = tpu.matmul %69, %56, %cst_15 {dimension_numbers = #tpu.dot_dimension_numbers<[2], [1], [1], [2], [0, 0, 0, 1, 1, 2], [0], [0]>} : vector<4x4x4xf32>, vector<4x4x8xf32>, vector<4x4x8xf32> -> vector<4x4x8xf32>
    "tpu.trace_stop"() : () -> ()
    %71 = vector.extract_strided_slice %70 {offsets = [0, 0, 0], sizes = [1, 4, 8], strides = [1, 1, 1]} : vector<4x4x8xf32> to vector<1x4x8xf32>
    %72 = vector.shape_cast %71 : vector<1x4x8xf32> to vector<4x8xf32>
    %73 = vector.extract_strided_slice %70 {offsets = [1, 0, 0], sizes = [1, 4, 8], strides = [1, 1, 1]} : vector<4x4x8xf32> to vector<1x4x8xf32>
    %74 = vector.shape_cast %73 : vector<1x4x8xf32> to vector<4x8xf32>
    %75 = vector.extract_strided_slice %70 {offsets = [2, 0, 0], sizes = [1, 4, 8], strides = [1, 1, 1]} : vector<4x4x8xf32> to vector<1x4x8xf32>
    %76 = vector.shape_cast %75 : vector<1x4x8xf32> to vector<4x8xf32>
    %77 = vector.extract_strided_slice %70 {offsets = [3, 0, 0], sizes = [1, 4, 8], strides = [1, 1, 1]} : vector<4x4x8xf32> to vector<1x4x8xf32>
    %78 = vector.shape_cast %77 : vector<1x4x8xf32> to vector<4x8xf32>
    %79 = tpu.concatenate %72, %74, %76, %78 in 1 : vector<4x8xf32>, vector<4x8xf32>, vector<4x8xf32>, vector<4x8xf32> -> vector<4x32xf32>
    %c0_16 = arith.constant 0 : index
    %c0_17 = arith.constant 0 : index
    %80 = vector.load %arg3[%c0_16, %c0_17] : memref<32x32xf32, #tpu.memory_space<vmem>>, vector<32x32xf32>
    %cst_18 = arith.constant dense<0.000000e+00> : vector<4x32xf32>
    %81 = tpu.matmul %79, %80, %cst_18 {dimension_numbers = #tpu.dot_dimension_numbers<[1], [1], [0], [0], [0, 0, 1, 0], [], []>} : vector<4x32xf32>, vector<32x32xf32>, vector<4x32xf32> -> vector<4x32xf32>
    %82 = vector.broadcast %6 : vector<1x32xf32> to vector<4x32xf32>
    %83 = arith.addf %81, %82 : vector<4x32xf32>
    %84 = arith.addf %18, %83 : vector<4x32xf32>
    %cst_19 = arith.constant dense<0.000000e+00> : vector<4xf32>
    %85 = vector.multi_reduction <add>, %84, %cst_19 [1] : vector<4x32xf32> to vector<4xf32>
    %86 = vector.shape_cast %85 : vector<4xf32> to vector<4x1xf32>
    %cst_20 = arith.constant 3.200000e+01 : f32
    %87 = vector.broadcast %cst_20 : f32 to vector<4x1xf32>
    %88 = arith.divf %86, %87 : vector<4x1xf32>
    %89 = vector.broadcast %88 : vector<4x1xf32> to vector<4x32xf32>
    %90 = arith.subf %84, %89 : vector<4x32xf32>
    %91 = arith.mulf %90, %90 : vector<4x32xf32>
    %cst_21 = arith.constant dense<0.000000e+00> : vector<4xf32>
    %92 = vector.multi_reduction <add>, %91, %cst_21 [1] : vector<4x32xf32> to vector<4xf32>
    %93 = vector.shape_cast %92 : vector<4xf32> to vector<4x1xf32>
    %cst_22 = arith.constant 3.200000e+01 : f32
    %94 = vector.broadcast %cst_22 : f32 to vector<4x1xf32>
    %95 = arith.divf %93, %94 : vector<4x1xf32>
    %96 = vector.broadcast %88 : vector<4x1xf32> to vector<4x32xf32>
    %97 = arith.subf %84, %96 : vector<4x32xf32>
    %cst_23 = arith.constant 9.99999974E-6 : f32
    %98 = vector.broadcast %cst_23 : f32 to vector<4x1xf32>
    %99 = arith.addf %95, %98 : vector<4x1xf32>
    %100 = math.rsqrt %99 : vector<4x1xf32>
    %101 = vector.broadcast %100 : vector<4x1xf32> to vector<4x32xf32>
    %102 = arith.mulf %97, %101 : vector<4x32xf32>
    %103 = vector.broadcast %7 : vector<1x32xf32> to vector<4x32xf32>
    %104 = arith.mulf %102, %103 : vector<4x32xf32>
    %105 = vector.broadcast %8 : vector<1x32xf32> to vector<4x32xf32>
    %106 = arith.addf %104, %105 : vector<4x32xf32>
    %c0_24 = arith.constant 0 : index
    %c0_25 = arith.constant 0 : index
    %107 = vector.load %arg4[%c0_24, %c0_25] : memref<32x32xf32, #tpu.memory_space<vmem>>, vector<32x32xf32>
    %cst_26 = arith.constant dense<0.000000e+00> : vector<4x32xf32>
    %108 = tpu.matmul %106, %107, %cst_26 {dimension_numbers = #tpu.dot_dimension_numbers<[1], [1], [0], [0], [0, 0, 1, 0], [], []>} : vector<4x32xf32>, vector<32x32xf32>, vector<4x32xf32> -> vector<4x32xf32>
    %109 = vector.broadcast %9 : vector<1x32xf32> to vector<4x32xf32>
    %110 = arith.addf %108, %109 : vector<4x32xf32>
    %cst_27 = arith.constant 0.000000e+00 : f32
    %111 = vector.broadcast %cst_27 : f32 to vector<4x32xf32>
    %112 = arith.maximumf %110, %111 : vector<4x32xf32>
    %c0_28 = arith.constant 0 : index
    %c0_29 = arith.constant 0 : index
    %113 = vector.load %arg5[%c0_28, %c0_29] : memref<128x32xf32, #tpu.memory_space<vmem>>, vector<128x32xf32>
    %cst_30 = arith.constant dense<0.000000e+00> : vector<4x128xf32>
    %114 = tpu.matmul %112, %113, %cst_30 {dimension_numbers = #tpu.dot_dimension_numbers<[1], [1], [0], [0], [0, 0, 1, 0], [], []>} : vector<4x32xf32>, vector<128x32xf32>, vector<4x128xf32> -> vector<4x128xf32>
    %115 = vector.broadcast %11 : vector<1x128xf32> to vector<4x128xf32>
    %116 = arith.addf %114, %115 : vector<4x128xf32>
    %117 = arith.negf %116 : vector<4x128xf32>
    %118 = math.exp %117 : vector<4x128xf32>
    %cst_31 = arith.constant 1.000000e+00 : f32
    %119 = vector.broadcast %cst_31 : f32 to vector<4x128xf32>
    %120 = arith.addf %119, %118 : vector<4x128xf32>
    %121 = arith.divf %119, %120 : vector<4x128xf32>
    %122 = vector.broadcast %12 : vector<1x128xf32> to vector<4x128xf32>
    %123 = arith.mulf %121, %122 : vector<4x128xf32>
    %c0_32 = arith.constant 0 : index
    %c0_33 = arith.constant 0 : index
    %124 = vector.load %arg8[%c0_32, %c0_33] : memref<4x128xf32, #tpu.memory_space<vmem>>, vector<4x128xf32>
    tpu.vector_store %arg8[%c0_32, %c0_33], %123 {strides = array<i32>} : memref<4x128xf32, #tpu.memory_space<vmem>>, vector<4x128xf32>,
    return
  }
}

</mosaic_0001>

<llo_original>
// kernel: simplified_causal_discovery_forward.1
$region0: #{simplified_causal_discovery_forward.1}
  #allocation0 [shape = 'u32[]', space=smem, size = 0x4, offset = 0x4, fixed_abs, tag = 'smem constant byte address 0x4 - core index']
  #allocation1 [shape = 'u32[144,128]{1,0:T(1,128)}', space=vmem, size = 0x12000, scoped, tag = 'internal scratch']
  %s0 = inlined_call_operand.vmem [shape: f32[4,8], index: 0, kind: input, shape index: {}]
  %s1 = inlined_call_operand.vmem [shape: f32[32,8], index: 1, kind: input, shape index: {}]
  %s2 = inlined_call_operand.vmem [shape: f32[96,32], index: 2, kind: input, shape index: {}]
  %s3 = inlined_call_operand.vmem [shape: f32[32,32], index: 3, kind: input, shape index: {}]
  %s4 = inlined_call_operand.vmem [shape: f32[32,32], index: 4, kind: input, shape index: {}]
  %s5 = inlined_call_operand.vmem [shape: f32[128,32], index: 5, kind: input, shape index: {}]
  %s6 = inlined_call_operand.vmem [shape: f32[8,32], index: 6, kind: input, shape index: {}]
  %s7 = inlined_call_operand.vmem [shape: f32[2,128], index: 7, kind: input, shape index: {}]
  %s8 = inlined_call_operand.vmem [shape: f32[4,128], index: 8, kind: output, shape index: {}]
  %s9 = sld [smem:[#allocation0]]
  $region42: #{simplified_causal_discovery_forward.1} parent=0
    _
  %s11 = ssub.s32 1, %s9
  %s12 = scalar_select 0, %s11, %s9
  // Predicated region
  $region2: #{simplified_causal_discovery_forward.1} parent=0 // pred_check
    _
  $region3: #{simplified_causal_discovery_forward.1} parent=0 // pred_check_branch
    %14 = sbr.rel (0) target = $region5
  $region4: #{simplified_causal_discovery_forward.1} parent=0 // pred_region
    _
  $region5: #{simplified_causal_discovery_forward.1} parent=0 // pred_fallthru
    _
  // Predicated region
  $region6: #{simplified_causal_discovery_forward.1} parent=0 // pred_check
    _
  $region7: #{simplified_causal_discovery_forward.1} parent=0 // pred_check_branch
    %16 = sbr.rel (0) target = $region9
  $region8: #{simplified_causal_discovery_forward.1} parent=0 // pred_region
    _
  $region9: #{simplified_causal_discovery_forward.1} parent=0 // pred_fallthru
    _
  // Predicated region
  $region10: #{simplified_causal_discovery_forward.1} parent=0 // pred_check
    _
  $region11: #{simplified_causal_discovery_forward.1} parent=0 // pred_check_branch
    %18 = sbr.rel (0) target = $region13
  $region12: #{simplified_causal_discovery_forward.1} parent=0 // pred_region
    _
  $region13: #{simplified_causal_discovery_forward.1} parent=0 // pred_fallthru
    _
  // Predicated region
  $region14: #{simplified_causal_discovery_forward.1} parent=0 // pred_check
    _
  $region15: #{simplified_causal_discovery_forward.1} parent=0 // pred_check_branch
    %20 = sbr.rel (0) target = $region17
  $region16: #{simplified_causal_discovery_forward.1} parent=0 // pred_region
    _
  $region17: #{simplified_causal_discovery_forward.1} parent=0 // pred_fallthru
    _
  // Predicated region
  $region18: #{simplified_causal_discovery_forward.1} parent=0 // pred_check
    _
  $region19: #{simplified_causal_discovery_forward.1} parent=0 // pred_check_branch
    %22 = sbr.rel (0) target = $region21
  $region20: #{simplified_causal_discovery_forward.1} parent=0 // pred_region
    _
  $region21: #{simplified_causal_discovery_forward.1} parent=0 // pred_fallthru
    _
  // Predicated region
  $region22: #{simplified_causal_discovery_forward.1} parent=0 // pred_check
    _
  $region23: #{simplified_causal_discovery_forward.1} parent=0 // pred_check_branch
    %24 = sbr.rel (0) target = $region25
  $region24: #{simplified_causal_discovery_forward.1} parent=0 // pred_region
    _
  $region25: #{simplified_causal_discovery_forward.1} parent=0 // pred_fallthru
    _
  // Predicated region
  $region26: #{simplified_causal_discovery_forward.1} parent=0 // pred_check
    _
  $region27: #{simplified_causal_discovery_forward.1} parent=0 // pred_check_branch
    %26 = sbr.rel (0) target = $region29
  $region28: #{simplified_causal_discovery_forward.1} parent=0 // pred_region
    _
  $region29: #{simplified_causal_discovery_forward.1} parent=0 // pred_fallthru
    _
  // Predicated region
  $region30: #{simplified_causal_discovery_forward.1} parent=0 // pred_check
    _
  $region31: #{simplified_causal_discovery_forward.1} parent=0 // pred_check_branch
    %28 = sbr.rel (0) target = $region33
  $region32: #{simplified_causal_discovery_forward.1} parent=0 // pred_region
    _
  $region33: #{simplified_causal_discovery_forward.1} parent=0 // pred_fallthru
    _
  %v29 = vld [vmem:[%s0] sm:$0xf]
  %v30 = vld [vmem:[%s6] sm:$0xff]
  %v31 = vld [vmem:[%s7] sm:$0x3]
  %v32 = vld [vmem:[%s1] sm:$0xff]
  %v33 = vld [vmem:[%s1 + $0x8] sm:$0xff]
  %v34 = vld [vmem:[%s1 + $0x10] sm:$0xff]
  %v35 = vld [vmem:[%s1 + $0x18] sm:$0xff]
  %v36 = vlaneseq
  %v37 = vshrl.u32 %v36, 7
  %v38 = vsub.s32 0, %v37
  %v39 = vrot.slane %v30, %v38
  %vm40 = vcmask 64512
  %v42 = vsel %vm40, %v29, 0
  %v45 = vsel %vm40, %v32, 0
  %v48 = vsel %vm40, %v33, 0
  %v51 = vsel %vm40, %v34, 0
  %v54 = vsel %vm40, %v35, 0
  %56 = vmatprep.subr.mxu0 0.0
  %57 = vmatpush1.xpose.msra.mxu0 0.0
  %58 = vmatprep.subr.mxu0 0.0
  %59 = vmatpush1.xpose.msra.mxu0 0.0
  %60 = vmatprep.subr.mxu0 0.0
  %61 = vmatpush1.xpose.msra.mxu0 0.0
  %62 = vmatprep.subr.mxu0 0.0
  %63 = vmatpush1.xpose.msra.mxu0 0.0
  %64 = vmatprep.subr.mxu0 0.0
  %65 = vmatpush1.xpose.msra.mxu0 0.0
  %66 = vmatprep.subr.mxu0 0.0
  %67 = vmatpush1.xpose.msra.mxu0 0.0
  %68 = vmatprep.subr.mxu0 0.0
  %69 = vmatpush1.xpose.msra.mxu0 0.0
  %70 = vmatprep.subr.mxu0 0.0
  %71 = vmatpush1.xpose.msra.mxu0 0.0
  %72 = vmatprep.subr.mxu0 0.0
  %73 = vmatpush1.xpose.msra.mxu0 0.0
  %74 = vmatprep.subr.mxu0 0.0
  %75 = vmatpush1.xpose.msra.mxu0 0.0
  %76 = vmatprep.subr.mxu0 0.0
  %77 = vmatpush1.xpose.msra.mxu0 0.0
  %78 = vmatprep.subr.mxu0 0.0
  %79 = vmatpush1.xpose.msra.mxu0 0.0
  %80 = vmatprep.subr.mxu0 0.0
  %81 = vmatpush1.xpose.msra.mxu0 %v54
  %82 = vmatprep.subr.mxu0 0.0
  %83 = vmatpush1.xpose.msra.mxu0 %v51
  %84 = vmatprep.subr.mxu0 0.0
  %85 = vmatpush1.xpose.msra.mxu0 %v48
  %86 = vmatprep.subr.mxu0 0.0
  %87 = vmatpush1.xpose.msra.mxu0 %v45
  %88 = vmatprep.subr.mxu0 0.0
  %89 = vmatpush2.xpose.msra.mxu0 0.0
  %90 = vmatprep.subr.mxu0 0.0
  %91 = vmatpush2.xpose.msra.mxu0 0.0
  %92 = vmatprep.subr.mxu0 0.0
  %93 = vmatpush2.xpose.msra.mxu0 0.0
  %94 = vmatprep.subr.mxu0 0.0
  %95 = vmatpush2.xpose.msra.mxu0 0.0
  %96 = vmatprep.subr.mxu0 0.0
  %97 = vmatpush2.xpose.msra.mxu0 0.0
  %98 = vmatprep.subr.mxu0 0.0
  %99 = vmatpush2.xpose.msra.mxu0 0.0
  %100 = vmatprep.subr.mxu0 0.0
  %101 = vmatpush2.xpose.msra.mxu0 0.0
  %102 = vmatprep.subr.mxu0 0.0
  %103 = vmatpush2.xpose.msra.mxu0 0.0
  %104 = vmatprep.subr.mxu0 0.0
  %105 = vmatpush2.xpose.msra.mxu0 0.0
  %106 = vmatprep.subr.mxu0 0.0
  %107 = vmatpush2.xpose.msra.mxu0 0.0
  %108 = vmatprep.subr.mxu0 0.0
  %109 = vmatpush2.xpose.msra.mxu0 0.0
  %110 = vmatprep.subr.mxu0 0.0
  %111 = vmatpush2.xpose.msra.mxu0 0.0
  %112 = vmatprep.subr.mxu0 0.0
  %113 = vmatpush2.xpose.msra.mxu0 0.0
  %114 = vmatprep.subr.mxu0 0.0
  %115 = vmatpush2.xpose.msra.mxu0 0.0
  %116 = vmatprep.subr.mxu0 0.0
  %117 = vmatpush2.xpose.msra.mxu0 0.0
  %118 = vmatprep.subr.mxu0 0.0
  %119 = vmatpush2.xpose.msra.mxu0 0.0
  %120 = vmatprep.mubr.f32.mxu0 0.0
  %121 = vmatmul.mubr.f32.gmra.mxu0 %v42
  %v122 = vpop.f32.mrf.mxu0
  %v123 = vadd.f32 %v39, %v122
  %v124 = vpop.f32.mrf.mxu0
  %125 = vdwg.mxu0
  %v126 = vmax.f32 %v123, 0.0
  %v127 = vld [vmem:[%s2] sm:$0xff]
  %v128 = vld [vmem:[%s2 + $0x8] sm:$0xff]
  %v129 = vld [vmem:[%s2 + $0x10] sm:$0xff]
  %v130 = vld [vmem:[%s2 + $0x18] sm:$0xff]
  %v131 = vld [vmem:[%s2 + $0x20] sm:$0xff]
  %v132 = vld [vmem:[%s2 + $0x28] sm:$0xff]
  %v133 = vld [vmem:[%s2 + $0x30] sm:$0xff]
  %v134 = vld [vmem:[%s2 + $0x38] sm:$0xff]
  %v135 = vld [vmem:[%s2 + $0x40] sm:$0xff]
  %v136 = vld [vmem:[%s2 + $0x48] sm:$0xff]
  %v137 = vld [vmem:[%s2 + $0x50] sm:$0xff]
  %v138 = vld [vmem:[%s2 + $0x58] sm:$0xff]
  %vm139 = vcmask 261120
  %v141 = vsel %vm139, %v126, 0
  %v144 = vsel %vm139, %v127, 0
  %v147 = vsel %vm139, %v128, 0
  %v150 = vsel %vm139, %v129, 0
  %v153 = vsel %vm139, %v130, 0
  %v156 = vsel %vm139, %v131, 0
  %v159 = vsel %vm139, %v132, 0
  %v162 = vsel %vm139, %v133, 0
  %v165 = vsel %vm139, %v134, 0
  %v168 = vsel %vm139, %v135, 0
  %v171 = vsel %vm139, %v136, 0
  %v174 = vsel %vm139, %v137, 0
  %v177 = vsel %vm139, %v138, 0
  %179 = vmatprep.subr.mxu0 0.0
  %180 = vmatpush1.xpose.msra.mxu0 0.0
  %181 = vmatprep.subr.mxu0 0.0
  %182 = vmatpush1.xpose.msra.mxu0 0.0
  %183 = vmatprep.subr.mxu0 0.0
  %184 = vmatpush1.xpose.msra.mxu0 0.0
  %185 = vmatprep.subr.mxu0 0.0
  %186 = vmatpush1.xpose.msra.mxu0 0.0
  %187 = vmatprep.subr.mxu0 0.0
  %188 = vmatpush1.xpose.msra.mxu0 %v177
  %189 = vmatprep.subr.mxu0 0.0
  %190 = vmatpush1.xpose.msra.mxu0 %v174
  %191 = vmatprep.subr.mxu0 0.0
  %192 = vmatpush1.xpose.msra.mxu0 %v171
  %193 = vmatprep.subr.mxu0 0.0
  %194 = vmatpush1.xpose.msra.mxu0 %v168
  %195 = vmatprep.subr.mxu0 0.0
  %196 = vmatpush1.xpose.msra.mxu0 %v165
  %197 = vmatprep.subr.mxu0 0.0
  %198 = vmatpush1.xpose.msra.mxu0 %v162
  %199 = vmatprep.subr.mxu0 0.0
  %200 = vmatpush1.xpose.msra.mxu0 %v159
  %201 = vmatprep.subr.mxu0 0.0
  %202 = vmatpush1.xpose.msra.mxu0 %v156
  %203 = vmatprep.subr.mxu0 0.0
  %204 = vmatpush1.xpose.msra.mxu0 %v153
  %205 = vmatprep.subr.mxu0 0.0
  %206 = vmatpush1.xpose.msra.mxu0 %v150
  %207 = vmatprep.subr.mxu0 0.0
  %208 = vmatpush1.xpose.msra.mxu0 %v147
  %209 = vmatprep.subr.mxu0 0.0
  %210 = vmatpush1.xpose.msra.mxu0 %v144
  %211 = vmatprep.subr.mxu0 0.0
  %212 = vmatpush2.xpose.msra.mxu0 0.0
  %213 = vmatprep.subr.mxu0 0.0
  %214 = vmatpush2.xpose.msra.mxu0 0.0
  %215 = vmatprep.subr.mxu0 0.0
  %216 = vmatpush2.xpose.msra.mxu0 0.0
  %217 = vmatprep.subr.mxu0 0.0
  %218 = vmatpush2.xpose.msra.mxu0 0.0
  %219 = vmatprep.subr.mxu0 0.0
  %220 = vmatpush2.xpose.msra.mxu0 0.0
  %221 = vmatprep.subr.mxu0 0.0
  %222 = vmatpush2.xpose.msra.mxu0 0.0
  %223 = vmatprep.subr.mxu0 0.0
  %224 = vmatpush2.xpose.msra.mxu0 0.0
  %225 = vmatprep.subr.mxu0 0.0
  %226 = vmatpush2.xpose.msra.mxu0 0.0
  %227 = vmatprep.subr.mxu0 0.0
  %228 = vmatpush2.xpose.msra.mxu0 0.0
  %229 = vmatprep.subr.mxu0 0.0
  %230 = vmatpush2.xpose.msra.mxu0 0.0
  %231 = vmatprep.subr.mxu0 0.0
  %232 = vmatpush2.xpose.msra.mxu0 0.0
  %233 = vmatprep.subr.mxu0 0.0
  %234 = vmatpush2.xpose.msra.mxu0 0.0
  %235 = vmatprep.subr.mxu0 0.0
  %236 = vmatpush2.xpose.msra.mxu0 0.0
  %237 = vmatprep.subr.mxu0 0.0
  %238 = vmatpush2.xpose.msra.mxu0 0.0
  %239 = vmatprep.subr.mxu0 0.0
  %240 = vmatpush2.xpose.msra.mxu0 0.0
  %241 = vmatprep.subr.mxu0 0.0
  %242 = vmatpush2.xpose.msra.mxu0 0.0
  %243 = vmatprep.mubr.f32.mxu0 0.0
  %244 = vmatmul.mubr.f32.gmra.mxu0 %v141
  %v245 = vpop.f32.mrf.mxu0
  %v246 = vadd.f32 0.0, %v245
  %v247 = vpop.f32.mrf.mxu0
  %248 = vdwg.mxu0
  %v249 = vlaneseq
  %v250 = vshrl.u32 %v249, 7
  %v251 = vsub.s32 1, %v250
  %v252 = vrot.slane %v30, %v251
  %v253 = vadd.f32 %v246, %v252
  %v254 = vlaneseq
  %v255 = vshrl.u32 %v254, 7
  %v256 = vsub.s32 2, %v255
  %v257 = vrot.slane %v30, %v256
  %259 = vrot.lane.b32.xlu0 %v257, 32
  %v260 = vpop.permute.xlu0 %259
  %v262 = vadd.f32 %v246, %v260
  %v263 = vlaneseq
  %v264 = vshrl.u32 %v263, 7
  %v265 = vsub.s32 3, %v264
  %v266 = vrot.slane %v30, %v265
  %268 = vrot.lane.b32.xlu0 %v266, 64
  %v269 = vpop.permute.xlu0 %268
  %v271 = vadd.f32 %v246, %v269
  %273 = vrot.lane.b32.xlu0 %v253, 120
  %v274 = vpop.permute.xlu0 %273
  %275 = vrot.lane.b32.xlu0 %v253, 112
  %v276 = vpop.permute.xlu0 %275
  %277 = vrot.lane.b32.xlu0 %v253, 104
  %v278 = vpop.permute.xlu0 %277
  %280 = vrot.lane.b32.xlu0 %v262, 120
  %v281 = vpop.permute.xlu0 %280
  %282 = vrot.lane.b32.xlu0 %v262, 112
  %v283 = vpop.permute.xlu0 %282
  %284 = vrot.lane.b32.xlu0 %v262, 104
  %v285 = vpop.permute.xlu0 %284
  %287 = vrot.lane.b32.xlu0 %v271, 120
  %v288 = vpop.permute.xlu0 %287
  %289 = vrot.lane.b32.xlu0 %v271, 112
  %v290 = vpop.permute.xlu0 %289
  %291 = vrot.lane.b32.xlu0 %v271, 104
  %v292 = vpop.permute.xlu0 %291
  %293 = vrot.lane.b32.xlu0 %v262, 96
  %v294 = vpop.permute.xlu0 %293
  %v295 = vsel %vm40, %v253, 0
  %v297 = vsel %vm40, %v294, 0
  %299 = vmatprep.subr.mxu0 0.0
  %300 = vmatpush1.xpose.msra.mxu0 0.0
  %301 = vmatprep.subr.mxu0 0.0
  %302 = vmatpush1.xpose.msra.mxu0 0.0
  %303 = vmatprep.subr.mxu0 0.0
  %304 = vmatpush1.xpose.msra.mxu0 0.0
  %305 = vmatprep.subr.mxu0 0.0
  %306 = vmatpush1.xpose.msra.mxu0 0.0
  %307 = vmatprep.subr.mxu0 0.0
  %308 = vmatpush1.xpose.msra.mxu0 0.0
  %309 = vmatprep.subr.mxu0 0.0
  %310 = vmatpush1.xpose.msra.mxu0 0.0
  %311 = vmatprep.subr.mxu0 0.0
  %312 = vmatpush1.xpose.msra.mxu0 0.0
  %313 = vmatprep.subr.mxu0 0.0
  %314 = vmatpush1.xpose.msra.mxu0 0.0
  %315 = vmatprep.subr.mxu0 0.0
  %316 = vmatpush1.xpose.msra.mxu0 0.0
  %317 = vmatprep.subr.mxu0 0.0
  %318 = vmatpush1.xpose.msra.mxu0 0.0
  %319 = vmatprep.subr.mxu0 0.0
  %320 = vmatpush1.xpose.msra.mxu0 0.0
  %321 = vmatprep.subr.mxu0 0.0
  %322 = vmatpush1.xpose.msra.mxu0 0.0
  %323 = vmatprep.subr.mxu0 0.0
  %324 = vmatpush1.xpose.msra.mxu0 0.0
  %325 = vmatprep.subr.mxu0 0.0
  %326 = vmatpush1.xpose.msra.mxu0 0.0
  %327 = vmatprep.subr.mxu0 0.0
  %328 = vmatpush1.xpose.msra.mxu0 0.0
  %329 = vmatprep.subr.mxu0 0.0
  %330 = vmatpush1.xpose.msra.mxu0 %v297
  %331 = vmatprep.subr.mxu0 0.0
  %332 = vmatpush2.xpose.msra.mxu0 0.0
  %333 = vmatprep.subr.mxu0 0.0
  %334 = vmatpush2.xpose.msra.mxu0 0.0
  %335 = vmatprep.subr.mxu0 0.0
  %336 = vmatpush2.xpose.msra.mxu0 0.0
  %337 = vmatprep.subr.mxu0 0.0
  %338 = vmatpush2.xpose.msra.mxu0 0.0
  %339 = vmatprep.subr.mxu0 0.0
  %340 = vmatpush2.xpose.msra.mxu0 0.0
  %341 = vmatprep.subr.mxu0 0.0
  %342 = vmatpush2.xpose.msra.mxu0 0.0
  %343 = vmatprep.subr.mxu0 0.0
  %344 = vmatpush2.xpose.msra.mxu0 0.0
  %345 = vmatprep.subr.mxu0 0.0
  %346 = vmatpush2.xpose.msra.mxu0 0.0
  %347 = vmatprep.subr.mxu0 0.0
  %348 = vmatpush2.xpose.msra.mxu0 0.0
  %349 = vmatprep.subr.mxu0 0.0
  %350 = vmatpush2.xpose.msra.mxu0 0.0
  %351 = vmatprep.subr.mxu0 0.0
  %352 = vmatpush2.xpose.msra.mxu0 0.0
  %353 = vmatprep.subr.mxu0 0.0
  %354 = vmatpush2.xpose.msra.mxu0 0.0
  %355 = vmatprep.subr.mxu0 0.0
  %356 = vmatpush2.xpose.msra.mxu0 0.0
  %357 = vmatprep.subr.mxu0 0.0
  %358 = vmatpush2.xpose.msra.mxu0 0.0
  %359 = vmatprep.subr.mxu0 0.0
  %360 = vmatpush2.xpose.msra.mxu0 0.0
  %361 = vmatprep.subr.mxu0 0.0
  %362 = vmatpush2.xpose.msra.mxu0 0.0
  %363 = vmatprep.mubr.f32.mxu0 0.0
  %364 = vmatmul.mubr.f32.gmra.mxu0 %v295
  %v365 = vpop.f32.mrf.mxu0
  %v366 = vadd.f32 0.0, %v365
  %v367 = vpop.f32.mrf.mxu0
  %368 = vdwg.mxu0
  %369 = vrot.lane.b32.xlu0 %v281, 96
  %v370 = vpop.permute.xlu0 %369
  %v371 = vsel %vm40, %v274, 0
  %v373 = vsel %vm40, %v370, 0
  %375 = vmatprep.subr.mxu0 0.0
  %376 = vmatpush1.xpose.msra.mxu0 0.0
  %377 = vmatprep.subr.mxu0 0.0
  %378 = vmatpush1.xpose.msra.mxu0 0.0
  %379 = vmatprep.subr.mxu0 0.0
  %380 = vmatpush1.xpose.msra.mxu0 0.0
  %381 = vmatprep.subr.mxu0 0.0
  %382 = vmatpush1.xpose.msra.mxu0 0.0
  %383 = vmatprep.subr.mxu0 0.0
  %384 = vmatpush1.xpose.msra.mxu0 0.0
  %385 = vmatprep.subr.mxu0 0.0
  %386 = vmatpush1.xpose.msra.mxu0 0.0
  %387 = vmatprep.subr.mxu0 0.0
  %388 = vmatpush1.xpose.msra.mxu0 0.0
  %389 = vmatprep.subr.mxu0 0.0
  %390 = vmatpush1.xpose.msra.mxu0 0.0
  %391 = vmatprep.subr.mxu0 0.0
  %392 = vmatpush1.xpose.msra.mxu0 0.0
  %393 = vmatprep.subr.mxu0 0.0
  %394 = vmatpush1.xpose.msra.mxu0 0.0
  %395 = vmatprep.subr.mxu0 0.0
  %396 = vmatpush1.xpose.msra.mxu0 0.0
  %397 = vmatprep.subr.mxu0 0.0
  %398 = vmatpush1.xpose.msra.mxu0 0.0
  %399 = vmatprep.subr.mxu0 0.0
  %400 = vmatpush1.xpose.msra.mxu0 0.0
  %401 = vmatprep.subr.mxu0 0.0
  %402 = vmatpush1.xpose.msra.mxu0 0.0
  %403 = vmatprep.subr.mxu0 0.0
  %404 = vmatpush1.xpose.msra.mxu0 0.0
  %405 = vmatprep.subr.mxu0 0.0
  %406 = vmatpush1.xpose.msra.mxu0 %v373
  %407 = vmatprep.subr.mxu0 0.0
  %408 = vmatpush2.xpose.msra.mxu0 0.0
  %409 = vmatprep.subr.mxu0 0.0
  %410 = vmatpush2.xpose.msra.mxu0 0.0
  %411 = vmatprep.subr.mxu0 0.0
  %412 = vmatpush2.xpose.msra.mxu0 0.0
  %413 = vmatprep.subr.mxu0 0.0
  %414 = vmatpush2.xpose.msra.mxu0 0.0
  %415 = vmatprep.subr.mxu0 0.0
  %416 = vmatpush2.xpose.msra.mxu0 0.0
  %417 = vmatprep.subr.mxu0 0.0
  %418 = vmatpush2.xpose.msra.mxu0 0.0
  %419 = vmatprep.subr.mxu0 0.0
  %420 = vmatpush2.xpose.msra.mxu0 0.0
  %421 = vmatprep.subr.mxu0 0.0
  %422 = vmatpush2.xpose.msra.mxu0 0.0
  %423 = vmatprep.subr.mxu0 0.0
  %424 = vmatpush2.xpose.msra.mxu0 0.0
  %425 = vmatprep.subr.mxu0 0.0
  %426 = vmatpush2.xpose.msra.mxu0 0.0
  %427 = vmatprep.subr.mxu0 0.0
  %428 = vmatpush2.xpose.msra.mxu0 0.0
  %429 = vmatprep.subr.mxu0 0.0
  %430 = vmatpush2.xpose.msra.mxu0 0.0
  %431 = vmatprep.subr.mxu0 0.0
  %432 = vmatpush2.xpose.msra.mxu0 0.0
  %433 = vmatprep.subr.mxu0 0.0
  %434 = vmatpush2.xpose.msra.mxu0 0.0
  %435 = vmatprep.subr.mxu0 0.0
  %436 = vmatpush2.xpose.msra.mxu0 0.0
  %437 = vmatprep.subr.mxu0 0.0
  %438 = vmatpush2.xpose.msra.mxu0 0.0
  %439 = vmatprep.mubr.f32.mxu0 0.0
  %440 = vmatmul.mubr.f32.gmra.mxu0 %v371
  %v441 = vpop.f32.mrf.mxu0
  %v442 = vadd.f32 0.0, %v441
  %v443 = vpop.f32.mrf.mxu0
  %444 = vdwg.mxu0
  %445 = vrot.lane.b32.xlu0 %v283, 96
  %v446 = vpop.permute.xlu0 %445
  %v447 = vsel %vm40, %v276, 0
  %v449 = vsel %vm40, %v446, 0
  %451 = vmatprep.subr.mxu0 0.0
  %452 = vmatpush1.xpose.msra.mxu0 0.0
  %453 = vmatprep.subr.mxu0 0.0
  %454 = vmatpush1.xpose.msra.mxu0 0.0
  %455 = vmatprep.subr.mxu0 0.0
  %456 = vmatpush1.xpose.msra.mxu0 0.0
  %457 = vmatprep.subr.mxu0 0.0
  %458 = vmatpush1.xpose.msra.mxu0 0.0
  %459 = vmatprep.subr.mxu0 0.0
  %460 = vmatpush1.xpose.msra.mxu0 0.0
  %461 = vmatprep.subr.mxu0 0.0
  %462 = vmatpush1.xpose.msra.mxu0 0.0
  %463 = vmatprep.subr.mxu0 0.0
  %464 = vmatpush1.xpose.msra.mxu0 0.0
  %465 = vmatprep.subr.mxu0 0.0
  %466 = vmatpush1.xpose.msra.mxu0 0.0
  %467 = vmatprep.subr.mxu0 0.0
  %468 = vmatpush1.xpose.msra.mxu0 0.0
  %469 = vmatprep.subr.mxu0 0.0
  %470 = vmatpush1.xpose.msra.mxu0 0.0
  %471 = vmatprep.subr.mxu0 0.0
  %472 = vmatpush1.xpose.msra.mxu0 0.0
  %473 = vmatprep.subr.mxu0 0.0
  %474 = vmatpush1.xpose.msra.mxu0 0.0
  %475 = vmatprep.subr.mxu0 0.0
  %476 = vmatpush1.xpose.msra.mxu0 0.0
  %477 = vmatprep.subr.mxu0 0.0
  %478 = vmatpush1.xpose.msra.mxu0 0.0
  %479 = vmatprep.subr.mxu0 0.0
  %480 = vmatpush1.xpose.msra.mxu0 0.0
  %481 = vmatprep.subr.mxu0 0.0
  %482 = vmatpush1.xpose.msra.mxu0 %v449
  %483 = vmatprep.subr.mxu0 0.0
  %484 = vmatpush2.xpose.msra.mxu0 0.0
  %485 = vmatprep.subr.mxu0 0.0
  %486 = vmatpush2.xpose.msra.mxu0 0.0
  %487 = vmatprep.subr.mxu0 0.0
  %488 = vmatpush2.xpose.msra.mxu0 0.0
  %489 = vmatprep.subr.mxu0 0.0
  %490 = vmatpush2.xpose.msra.mxu0 0.0
  %491 = vmatprep.subr.mxu0 0.0
  %492 = vmatpush2.xpose.msra.mxu0 0.0
  %493 = vmatprep.subr.mxu0 0.0
  %494 = vmatpush2.xpose.msra.mxu0 0.0
  %495 = vmatprep.subr.mxu0 0.0
  %496 = vmatpush2.xpose.msra.mxu0 0.0
  %497 = vmatprep.subr.mxu0 0.0
  %498 = vmatpush2.xpose.msra.mxu0 0.0
  %499 = vmatprep.subr.mxu0 0.0
  %500 = vmatpush2.xpose.msra.mxu0 0.0
  %501 = vmatprep.subr.mxu0 0.0
  %502 = vmatpush2.xpose.msra.mxu0 0.0
  %503 = vmatprep.subr.mxu0 0.0
  %504 = vmatpush2.xpose.msra.mxu0 0.0
  %505 = vmatprep.subr.mxu0 0.0
  %506 = vmatpush2.xpose.msra.mxu0 0.0
  %507 = vmatprep.subr.mxu0 0.0
  %508 = vmatpush2.xpose.msra.mxu0 0.0
  %509 = vmatprep.subr.mxu0 0.0
  %510 = vmatpush2.xpose.msra.mxu0 0.0
  %511 = vmatprep.subr.mxu0 0.0
  %512 = vmatpush2.xpose.msra.mxu0 0.0
  %513 = vmatprep.subr.mxu0 0.0
  %514 = vmatpush2.xpose.msra.mxu0 0.0
  %515 = vmatprep.mubr.f32.mxu0 0.0
  %516 = vmatmul.mubr.f32.gmra.mxu0 %v447
  %v517 = vpop.f32.mrf.mxu0
  %v518 = vadd.f32 0.0, %v517
  %v519 = vpop.f32.mrf.mxu0
  %520 = vdwg.mxu0
  %521 = vrot.lane.b32.xlu0 %v285, 96
  %v522 = vpop.permute.xlu0 %521
  %v523 = vsel %vm40, %v278, 0
  %v525 = vsel %vm40, %v522, 0
  %527 = vmatprep.subr.mxu0 0.0
  %528 = vmatpush1.xpose.msra.mxu0 0.0
  %529 = vmatprep.subr.mxu0 0.0
  %530 = vmatpush1.xpose.msra.mxu0 0.0
  %531 = vmatprep.subr.mxu0 0.0
  %532 = vmatpush1.xpose.msra.mxu0 0.0
  %533 = vmatprep.subr.mxu0 0.0
  %534 = vmatpush1.xpose.msra.mxu0 0.0
  %535 = vmatprep.subr.mxu0 0.0
  %536 = vmatpush1.xpose.msra.mxu0 0.0
  %537 = vmatprep.subr.mxu0 0.0
  %538 = vmatpush1.xpose.msra.mxu0 0.0
  %539 = vmatprep.subr.mxu0 0.0
  %540 = vmatpush1.xpose.msra.mxu0 0.0
  %541 = vmatprep.subr.mxu0 0.0
  %542 = vmatpush1.xpose.msra.mxu0 0.0
  %543 = vmatprep.subr.mxu0 0.0
  %544 = vmatpush1.xpose.msra.mxu0 0.0
  %545 = vmatprep.subr.mxu0 0.0
  %546 = vmatpush1.xpose.msra.mxu0 0.0
  %547 = vmatprep.subr.mxu0 0.0
  %548 = vmatpush1.xpose.msra.mxu0 0.0
  %549 = vmatprep.subr.mxu0 0.0
  %550 = vmatpush1.xpose.msra.mxu0 0.0
  %551 = vmatprep.subr.mxu0 0.0
  %552 = vmatpush1.xpose.msra.mxu0 0.0
  %553 = vmatprep.subr.mxu0 0.0
  %554 = vmatpush1.xpose.msra.mxu0 0.0
  %555 = vmatprep.subr.mxu0 0.0
  %556 = vmatpush1.xpose.msra.mxu0 0.0
  %557 = vmatprep.subr.mxu0 0.0
  %558 = vmatpush1.xpose.msra.mxu0 %v525
  %559 = vmatprep.subr.mxu0 0.0
  %560 = vmatpush2.xpose.msra.mxu0 0.0
  %561 = vmatprep.subr.mxu0 0.0
  %562 = vmatpush2.xpose.msra.mxu0 0.0
  %563 = vmatprep.subr.mxu0 0.0
  %564 = vmatpush2.xpose.msra.mxu0 0.0
  %565 = vmatprep.subr.mxu0 0.0
  %566 = vmatpush2.xpose.msra.mxu0 0.0
  %567 = vmatprep.subr.mxu0 0.0
  %568 = vmatpush2.xpose.msra.mxu0 0.0
  %569 = vmatprep.subr.mxu0 0.0
  %570 = vmatpush2.xpose.msra.mxu0 0.0
  %571 = vmatprep.subr.mxu0 0.0
  %572 = vmatpush2.xpose.msra.mxu0 0.0
  %573 = vmatprep.subr.mxu0 0.0
  %574 = vmatpush2.xpose.msra.mxu0 0.0
  %575 = vmatprep.subr.mxu0 0.0
  %576 = vmatpush2.xpose.msra.mxu0 0.0
  %577 = vmatprep.subr.mxu0 0.0
  %578 = vmatpush2.xpose.msra.mxu0 0.0
  %579 = vmatprep.subr.mxu0 0.0
  %580 = vmatpush2.xpose.msra.mxu0 0.0
  %581 = vmatprep.subr.mxu0 0.0
  %582 = vmatpush2.xpose.msra.mxu0 0.0
  %583 = vmatprep.subr.mxu0 0.0
  %584 = vmatpush2.xpose.msra.mxu0 0.0
  %585 = vmatprep.subr.mxu0 0.0
  %586 = vmatpush2.xpose.msra.mxu0 0.0
  %587 = vmatprep.subr.mxu0 0.0
  %588 = vmatpush2.xpose.msra.mxu0 0.0
  %589 = vmatprep.subr.mxu0 0.0
  %590 = vmatpush2.xpose.msra.mxu0 0.0
  %591 = vmatprep.mubr.f32.mxu0 0.0
  %592 = vmatmul.mubr.f32.gmra.mxu0 %v523
  %v593 = vpop.f32.mrf.mxu0
  %v594 = vadd.f32 0.0, %v593
  %v595 = vpop.f32.mrf.mxu0
  %596 = vdwg.mxu0
  %v597 = vmul.f32 %v366, 0.35355338
  %v598 = vmul.f32 %v442, 0.35355338
  %v599 = vmul.f32 %v518, 0.35355338
  %v600 = vmul.f32 %v594, 0.35355338
  %vm601 = vcmask 27648
  %v602 = vsel %vm601, %v597, -inf
  %603 = vmax.xlane.f32.xlu0 %v602
  %v604 = vpop.xlane.xlu0 %603
  %v605 = vsel %vm601, %v598, -inf
  %606 = vmax.xlane.f32.xlu0 %v605
  %v607 = vpop.xlane.xlu0 %606
  %v608 = vsel %vm601, %v599, -inf
  %609 = vmax.xlane.f32.xlu0 %v608
  %v610 = vpop.xlane.xlu0 %609
  %v611 = vsel %vm601, %v600, -inf
  %612 = vmax.xlane.f32.xlu0 %v611
  %v613 = vpop.xlane.xlu0 %612
  %v614 = vsub.f32 %v597, %v604
  %v615 = vsub.f32 %v598, %v607
  %v616 = vsub.f32 %v599, %v610
  %v617 = vsub.f32 %v600, %v613
  %v618 = vmul.f32 %v614, 1.442695
  %v619 = vpow.pop %v618
  %v620 = vmul.f32 %v615, 1.442695
  %v621 = vpow.pop %v620
  %v622 = vmul.f32 %v616, 1.442695
  %v623 = vpow.pop %v622
  %v624 = vmul.f32 %v617, 1.442695
  %v625 = vpow.pop %v624
  %v626 = vsel %vm601, %v619, 0.0
  %627 = vadd.xlane.f32.xlu0 %v626
  %v628 = vpop.xlane.xlu0 %627
  %v629 = vsel %vm601, %v621, 0.0
  %630 = vadd.xlane.f32.xlu0 %v629
  %v631 = vpop.xlane.xlu0 %630
  %v632 = vsel %vm601, %v623, 0.0
  %633 = vadd.xlane.f32.xlu0 %v632
  %v634 = vpop.xlane.xlu0 %633
  %v635 = vsel %vm601, %v625, 0.0
  %636 = vadd.xlane.f32.xlu0 %v635
  %v637 = vpop.xlane.xlu0 %636
  %v638 = vrcp.pop %v628
  %v639 = vrcp.pop %v631
  %v640 = vrcp.pop %v634
  %v641 = vrcp.pop %v637
  %v642 = vmul.f32 %v619, %v638
  %v643 = vmul.f32 %v621, %v639
  %v644 = vmul.f32 %v623, %v640
  %v645 = vmul.f32 %v625, %v641
  %646 = vrot.lane.b32.xlu0 %v271, 64
  %v647 = vpop.permute.xlu0 %646
  %vm648 = vcmask 31744
  %v650 = vsel %vm648, %v642, 0
  %vm652 = vcmask 1043456
  %v653 = vsel %vm652, %v647, 0
  %655 = vmatprep.subr.mxu0 0.0
  %656 = vmatpush1.msra.mxu0 0.0
  %657 = vmatprep.subr.mxu0 0.0
  %658 = vmatpush1.msra.mxu0 0.0
  %659 = vmatprep.subr.mxu0 0.0
  %660 = vmatpush1.msra.mxu0 0.0
  %661 = vmatprep.subr.mxu0 0.0
  %662 = vmatpush1.msra.mxu0 0.0
  %663 = vmatprep.subr.mxu0 0.0
  %664 = vmatpush1.msra.mxu0 0.0
  %665 = vmatprep.subr.mxu0 0.0
  %666 = vmatpush1.msra.mxu0 0.0
  %667 = vmatprep.subr.mxu0 0.0
  %668 = vmatpush1.msra.mxu0 0.0
  %669 = vmatprep.subr.mxu0 0.0
  %670 = vmatpush1.msra.mxu0 0.0
  %671 = vmatprep.subr.mxu0 0.0
  %672 = vmatpush1.msra.mxu0 0.0
  %673 = vmatprep.subr.mxu0 0.0
  %674 = vmatpush1.msra.mxu0 0.0
  %675 = vmatprep.subr.mxu0 0.0
  %676 = vmatpush1.msra.mxu0 0.0
  %677 = vmatprep.subr.mxu0 0.0
  %678 = vmatpush1.msra.mxu0 0.0
  %679 = vmatprep.subr.mxu0 0.0
  %680 = vmatpush1.msra.mxu0 0.0
  %681 = vmatprep.subr.mxu0 0.0
  %682 = vmatpush1.msra.mxu0 0.0
  %683 = vmatprep.subr.mxu0 0.0
  %684 = vmatpush1.msra.mxu0 0.0
  %685 = vmatprep.subr.mxu0 0.0
  %686 = vmatpush1.msra.mxu0 %v653
  %687 = vmatprep.subr.mxu0 0.0
  %688 = vmatpush2.msra.mxu0 0.0
  %689 = vmatprep.subr.mxu0 0.0
  %690 = vmatpush2.msra.mxu0 0.0
  %691 = vmatprep.subr.mxu0 0.0
  %692 = vmatpush2.msra.mxu0 0.0
  %693 = vmatprep.subr.mxu0 0.0
  %694 = vmatpush2.msra.mxu0 0.0
  %695 = vmatprep.subr.mxu0 0.0
  %696 = vmatpush2.msra.mxu0 0.0
  %697 = vmatprep.subr.mxu0 0.0
  %698 = vmatpush2.msra.mxu0 0.0
  %699 = vmatprep.subr.mxu0 0.0
  %700 = vmatpush2.msra.mxu0 0.0
  %701 = vmatprep.subr.mxu0 0.0
  %702 = vmatpush2.msra.mxu0 0.0
  %703 = vmatprep.subr.mxu0 0.0
  %704 = vmatpush2.msra.mxu0 0.0
  %705 = vmatprep.subr.mxu0 0.0
  %706 = vmatpush2.msra.mxu0 0.0
  %707 = vmatprep.subr.mxu0 0.0
  %708 = vmatpush2.msra.mxu0 0.0
  %709 = vmatprep.subr.mxu0 0.0
  %710 = vmatpush2.msra.mxu0 0.0
  %711 = vmatprep.subr.mxu0 0.0
  %712 = vmatpush2.msra.mxu0 0.0
  %713 = vmatprep.subr.mxu0 0.0
  %714 = vmatpush2.msra.mxu0 0.0
  %715 = vmatprep.subr.mxu0 0.0
  %716 = vmatpush2.msra.mxu0 0.0
  %717 = vmatprep.subr.mxu0 0.0
  %718 = vmatpush2.msra.mxu0 0.0
  %719 = vmatprep.mubr.f32.mxu0 0.0
  %720 = vmatmul.mubr.f32.gmra.mxu0 %v650
  %v721 = vpop.f32.mrf.mxu0
  %v722 = vadd.f32 0.0, %v721
  %v723 = vpop.f32.mrf.mxu0
  %724 = vdwg.mxu0
  %725 = vrot.lane.b32.xlu0 %v288, 64
  %v726 = vpop.permute.xlu0 %725
  %v728 = vsel %vm648, %v643, 0
  %v730 = vsel %vm652, %v726, 0
  %732 = vmatprep.subr.mxu0 0.0
  %733 = vmatpush1.msra.mxu0 0.0
  %734 = vmatprep.subr.mxu0 0.0
  %735 = vmatpush1.msra.mxu0 0.0
  %736 = vmatprep.subr.mxu0 0.0
  %737 = vmatpush1.msra.mxu0 0.0
  %738 = vmatprep.subr.mxu0 0.0
  %739 = vmatpush1.msra.mxu0 0.0
  %740 = vmatprep.subr.mxu0 0.0
  %741 = vmatpush1.msra.mxu0 0.0
  %742 = vmatprep.subr.mxu0 0.0
  %743 = vmatpush1.msra.mxu0 0.0
  %744 = vmatprep.subr.mxu0 0.0
  %745 = vmatpush1.msra.mxu0 0.0
  %746 = vmatprep.subr.mxu0 0.0
  %747 = vmatpush1.msra.mxu0 0.0
  %748 = vmatprep.subr.mxu0 0.0
  %749 = vmatpush1.msra.mxu0 0.0
  %750 = vmatprep.subr.mxu0 0.0
  %751 = vmatpush1.msra.mxu0 0.0
  %752 = vmatprep.subr.mxu0 0.0
  %753 = vmatpush1.msra.mxu0 0.0
  %754 = vmatprep.subr.mxu0 0.0
  %755 = vmatpush1.msra.mxu0 0.0
  %756 = vmatprep.subr.mxu0 0.0
  %757 = vmatpush1.msra.mxu0 0.0
  %758 = vmatprep.subr.mxu0 0.0
  %759 = vmatpush1.msra.mxu0 0.0
  %760 = vmatprep.subr.mxu0 0.0
  %761 = vmatpush1.msra.mxu0 0.0
  %762 = vmatprep.subr.mxu0 0.0
  %763 = vmatpush1.msra.mxu0 %v730
  %764 = vmatprep.subr.mxu0 0.0
  %765 = vmatpush2.msra.mxu0 0.0
  %766 = vmatprep.subr.mxu0 0.0
  %767 = vmatpush2.msra.mxu0 0.0
  %768 = vmatprep.subr.mxu0 0.0
  %769 = vmatpush2.msra.mxu0 0.0
  %770 = vmatprep.subr.mxu0 0.0
  %771 = vmatpush2.msra.mxu0 0.0
  %772 = vmatprep.subr.mxu0 0.0
  %773 = vmatpush2.msra.mxu0 0.0
  %774 = vmatprep.subr.mxu0 0.0
  %775 = vmatpush2.msra.mxu0 0.0
  %776 = vmatprep.subr.mxu0 0.0
  %777 = vmatpush2.msra.mxu0 0.0
  %778 = vmatprep.subr.mxu0 0.0
  %779 = vmatpush2.msra.mxu0 0.0
  %780 = vmatprep.subr.mxu0 0.0
  %781 = vmatpush2.msra.mxu0 0.0
  %782 = vmatprep.subr.mxu0 0.0
  %783 = vmatpush2.msra.mxu0 0.0
  %784 = vmatprep.subr.mxu0 0.0
  %785 = vmatpush2.msra.mxu0 0.0
  %786 = vmatprep.subr.mxu0 0.0
  %787 = vmatpush2.msra.mxu0 0.0
  %788 = vmatprep.subr.mxu0 0.0
  %789 = vmatpush2.msra.mxu0 0.0
  %790 = vmatprep.subr.mxu0 0.0
  %791 = vmatpush2.msra.mxu0 0.0
  %792 = vmatprep.subr.mxu0 0.0
  %793 = vmatpush2.msra.mxu0 0.0
  %794 = vmatprep.subr.mxu0 0.0
  %795 = vmatpush2.msra.mxu0 0.0
  %796 = vmatprep.mubr.f32.mxu0 0.0
  %797 = vmatmul.mubr.f32.gmra.mxu0 %v728
  %v798 = vpop.f32.mrf.mxu0
  %v799 = vadd.f32 0.0, %v798
  %v800 = vpop.f32.mrf.mxu0
  %801 = vdwg.mxu0
  %802 = vrot.lane.b32.xlu0 %v290, 64
  %v803 = vpop.permute.xlu0 %802
  %v805 = vsel %vm648, %v644, 0
  %v807 = vsel %vm652, %v803, 0
  %809 = vmatprep.subr.mxu0 0.0
  %810 = vmatpush1.msra.mxu0 0.0
  %811 = vmatprep.subr.mxu0 0.0
  %812 = vmatpush1.msra.mxu0 0.0
  %813 = vmatprep.subr.mxu0 0.0
  %814 = vmatpush1.msra.mxu0 0.0
  %815 = vmatprep.subr.mxu0 0.0
  %816 = vmatpush1.msra.mxu0 0.0
  %817 = vmatprep.subr.mxu0 0.0
  %818 = vmatpush1.msra.mxu0 0.0
  %819 = vmatprep.subr.mxu0 0.0
  %820 = vmatpush1.msra.mxu0 0.0
  %821 = vmatprep.subr.mxu0 0.0
  %822 = vmatpush1.msra.mxu0 0.0
  %823 = vmatprep.subr.mxu0 0.0
  %824 = vmatpush1.msra.mxu0 0.0
  %825 = vmatprep.subr.mxu0 0.0
  %826 = vmatpush1.msra.mxu0 0.0
  %827 = vmatprep.subr.mxu0 0.0
  %828 = vmatpush1.msra.mxu0 0.0
  %829 = vmatprep.subr.mxu0 0.0
  %830 = vmatpush1.msra.mxu0 0.0
  %831 = vmatprep.subr.mxu0 0.0
  %832 = vmatpush1.msra.mxu0 0.0
  %833 = vmatprep.subr.mxu0 0.0
  %834 = vmatpush1.msra.mxu0 0.0
  %835 = vmatprep.subr.mxu0 0.0
  %836 = vmatpush1.msra.mxu0 0.0
  %837 = vmatprep.subr.mxu0 0.0
  %838 = vmatpush1.msra.mxu0 0.0
  %839 = vmatprep.subr.mxu0 0.0
  %840 = vmatpush1.msra.mxu0 %v807
  %841 = vmatprep.subr.mxu0 0.0
  %842 = vmatpush2.msra.mxu0 0.0
  %843 = vmatprep.subr.mxu0 0.0
  %844 = vmatpush2.msra.mxu0 0.0
  %845 = vmatprep.subr.mxu0 0.0
  %846 = vmatpush2.msra.mxu0 0.0
  %847 = vmatprep.subr.mxu0 0.0
  %848 = vmatpush2.msra.mxu0 0.0
  %849 = vmatprep.subr.mxu0 0.0
  %850 = vmatpush2.msra.mxu0 0.0
  %851 = vmatprep.subr.mxu0 0.0
  %852 = vmatpush2.msra.mxu0 0.0
  %853 = vmatprep.subr.mxu0 0.0
  %854 = vmatpush2.msra.mxu0 0.0
  %855 = vmatprep.subr.mxu0 0.0
  %856 = vmatpush2.msra.mxu0 0.0
  %857 = vmatprep.subr.mxu0 0.0
  %858 = vmatpush2.msra.mxu0 0.0
  %859 = vmatprep.subr.mxu0 0.0
  %860 = vmatpush2.msra.mxu0 0.0
  %861 = vmatprep.subr.mxu0 0.0
  %862 = vmatpush2.msra.mxu0 0.0
  %863 = vmatprep.subr.mxu0 0.0
  %864 = vmatpush2.msra.mxu0 0.0
  %865 = vmatprep.subr.mxu0 0.0
  %866 = vmatpush2.msra.mxu0 0.0
  %867 = vmatprep.subr.mxu0 0.0
  %868 = vmatpush2.msra.mxu0 0.0
  %869 = vmatprep.subr.mxu0 0.0
  %870 = vmatpush2.msra.mxu0 0.0
  %871 = vmatprep.subr.mxu0 0.0
  %872 = vmatpush2.msra.mxu0 0.0
  %873 = vmatprep.mubr.f32.mxu0 0.0
  %874 = vmatmul.mubr.f32.gmra.mxu0 %v805
  %v875 = vpop.f32.mrf.mxu0
  %v876 = vadd.f32 0.0, %v875
  %v877 = vpop.f32.mrf.mxu0
  %878 = vdwg.mxu0
  %879 = vrot.lane.b32.xlu0 %v292, 64
  %v880 = vpop.permute.xlu0 %879
  %v882 = vsel %vm648, %v645, 0
  %v884 = vsel %vm652, %v880, 0
  %886 = vmatprep.subr.mxu0 0.0
  %887 = vmatpush1.msra.mxu0 0.0
  %888 = vmatprep.subr.mxu0 0.0
  %889 = vmatpush1.msra.mxu0 0.0
  %890 = vmatprep.subr.mxu0 0.0
  %891 = vmatpush1.msra.mxu0 0.0
  %892 = vmatprep.subr.mxu0 0.0
  %893 = vmatpush1.msra.mxu0 0.0
  %894 = vmatprep.subr.mxu0 0.0
  %895 = vmatpush1.msra.mxu0 0.0
  %896 = vmatprep.subr.mxu0 0.0
  %897 = vmatpush1.msra.mxu0 0.0
  %898 = vmatprep.subr.mxu0 0.0
  %899 = vmatpush1.msra.mxu0 0.0
  %900 = vmatprep.subr.mxu0 0.0
  %901 = vmatpush1.msra.mxu0 0.0
  %902 = vmatprep.subr.mxu0 0.0
  %903 = vmatpush1.msra.mxu0 0.0
  %904 = vmatprep.subr.mxu0 0.0
  %905 = vmatpush1.msra.mxu0 0.0
  %906 = vmatprep.subr.mxu0 0.0
  %907 = vmatpush1.msra.mxu0 0.0
  %908 = vmatprep.subr.mxu0 0.0
  %909 = vmatpush1.msra.mxu0 0.0
  %910 = vmatprep.subr.mxu0 0.0
  %911 = vmatpush1.msra.mxu0 0.0
  %912 = vmatprep.subr.mxu0 0.0
  %913 = vmatpush1.msra.mxu0 0.0
  %914 = vmatprep.subr.mxu0 0.0
  %915 = vmatpush1.msra.mxu0 0.0
  %916 = vmatprep.subr.mxu0 0.0
  %917 = vmatpush1.msra.mxu0 %v884
  %918 = vmatprep.subr.mxu0 0.0
  %919 = vmatpush2.msra.mxu0 0.0
  %920 = vmatprep.subr.mxu0 0.0
  %921 = vmatpush2.msra.mxu0 0.0
  %922 = vmatprep.subr.mxu0 0.0
  %923 = vmatpush2.msra.mxu0 0.0
  %924 = vmatprep.subr.mxu0 0.0
  %925 = vmatpush2.msra.mxu0 0.0
  %926 = vmatprep.subr.mxu0 0.0
  %927 = vmatpush2.msra.mxu0 0.0
  %928 = vmatprep.subr.mxu0 0.0
  %929 = vmatpush2.msra.mxu0 0.0
  %930 = vmatprep.subr.mxu0 0.0
  %931 = vmatpush2.msra.mxu0 0.0
  %932 = vmatprep.subr.mxu0 0.0
  %933 = vmatpush2.msra.mxu0 0.0
  %934 = vmatprep.subr.mxu0 0.0
  %935 = vmatpush2.msra.mxu0 0.0
  %936 = vmatprep.subr.mxu0 0.0
  %937 = vmatpush2.msra.mxu0 0.0
  %938 = vmatprep.subr.mxu0 0.0
  %939 = vmatpush2.msra.mxu0 0.0
  %940 = vmatprep.subr.mxu0 0.0
  %941 = vmatpush2.msra.mxu0 0.0
  %942 = vmatprep.subr.mxu0 0.0
  %943 = vmatpush2.msra.mxu0 0.0
  %944 = vmatprep.subr.mxu0 0.0
  %945 = vmatpush2.msra.mxu0 0.0
  %946 = vmatprep.subr.mxu0 0.0
  %947 = vmatpush2.msra.mxu0 0.0
  %948 = vmatprep.subr.mxu0 0.0
  %949 = vmatpush2.msra.mxu0 0.0
  %950 = vmatprep.mubr.f32.mxu0 0.0
  %951 = vmatmul.mubr.f32.gmra.mxu0 %v882
  %v952 = vpop.f32.mrf.mxu0
  %v953 = vadd.f32 0.0, %v952
  %v954 = vpop.f32.mrf.mxu0
  %955 = vdwg.mxu0
  %957 = vrot.lane.b32.xlu0 %v799, 8
  %v958 = vpop.permute.xlu0 %957
  %961 = vrot.lane.b32.xlu0 %v876, 16
  %v962 = vpop.permute.xlu0 %961
  %965 = vrot.lane.b32.xlu0 %v953, 24
  %v966 = vpop.permute.xlu0 %965
  %v968 = vsel %vm40, %v722, %v958
  %vm969 = vcmask 130048
  %v970 = vsel %vm969, %v968, %v962
  %vm971 = vcmask 195584
  %v972 = vsel %vm971, %v970, %v966
  %v973 = vld [vmem:[%s3] sm:$0xff]
  %v974 = vld [vmem:[%s3 + $0x8] sm:$0xff]
  %v975 = vld [vmem:[%s3 + $0x10] sm:$0xff]
  %v976 = vld [vmem:[%s3 + $0x18] sm:$0xff]
  %v977 = vlaneseq
  %v978 = vshrl.u32 %v977, 7
  %v979 = vsub.s32 4, %v978
  %v980 = vrot.slane %v30, %v979
  %v982 = vsel %vm139, %v972, 0
  %v985 = vsel %vm139, %v973, 0
  %v988 = vsel %vm139, %v974, 0
  %v991 = vsel %vm139, %v975, 0
  %v994 = vsel %vm139, %v976, 0
  %996 = vmatprep.subr.mxu0 0.0
  %997 = vmatpush1.xpose.msra.mxu0 0.0
  %998 = vmatprep.subr.mxu0 0.0
  %999 = vmatpush1.xpose.msra.mxu0 0.0
  %1000 = vmatprep.subr.mxu0 0.0
  %1001 = vmatpush1.xpose.msra.mxu0 0.0
  %1002 = vmatprep.subr.mxu0 0.0
  %1003 = vmatpush1.xpose.msra.mxu0 0.0
  %1004 = vmatprep.subr.mxu0 0.0
  %1005 = vmatpush1.xpose.msra.mxu0 0.0
  %1006 = vmatprep.subr.mxu0 0.0
  %1007 = vmatpush1.xpose.msra.mxu0 0.0
  %1008 = vmatprep.subr.mxu0 0.0
  %1009 = vmatpush1.xpose.msra.mxu0 0.0
  %1010 = vmatprep.subr.mxu0 0.0
  %1011 = vmatpush1.xpose.msra.mxu0 0.0
  %1012 = vmatprep.subr.mxu0 0.0
  %1013 = vmatpush1.xpose.msra.mxu0 0.0
  %1014 = vmatprep.subr.mxu0 0.0
  %1015 = vmatpush1.xpose.msra.mxu0 0.0
  %1016 = vmatprep.subr.mxu0 0.0
  %1017 = vmatpush1.xpose.msra.mxu0 0.0
  %1018 = vmatprep.subr.mxu0 0.0
  %1019 = vmatpush1.xpose.msra.mxu0 0.0
  %1020 = vmatprep.subr.mxu0 0.0
  %1021 = vmatpush1.xpose.msra.mxu0 %v994
  %1022 = vmatprep.subr.mxu0 0.0
  %1023 = vmatpush1.xpose.msra.mxu0 %v991
  %1024 = vmatprep.subr.mxu0 0.0
  %1025 = vmatpush1.xpose.msra.mxu0 %v988
  %1026 = vmatprep.subr.mxu0 0.0
  %1027 = vmatpush1.xpose.msra.mxu0 %v985
  %1028 = vmatprep.subr.mxu0 0.0
  %1029 = vmatpush2.xpose.msra.mxu0 0.0
  %1030 = vmatprep.subr.mxu0 0.0
  %1031 = vmatpush2.xpose.msra.mxu0 0.0
  %1032 = vmatprep.subr.mxu0 0.0
  %1033 = vmatpush2.xpose.msra.mxu0 0.0
  %1034 = vmatprep.subr.mxu0 0.0
  %1035 = vmatpush2.xpose.msra.mxu0 0.0
  %1036 = vmatprep.subr.mxu0 0.0
  %1037 = vmatpush2.xpose.msra.mxu0 0.0
  %1038 = vmatprep.subr.mxu0 0.0
  %1039 = vmatpush2.xpose.msra.mxu0 0.0
  %1040 = vmatprep.subr.mxu0 0.0
  %1041 = vmatpush2.xpose.msra.mxu0 0.0
  %1042 = vmatprep.subr.mxu0 0.0
  %1043 = vmatpush2.xpose.msra.mxu0 0.0
  %1044 = vmatprep.subr.mxu0 0.0
  %1045 = vmatpush2.xpose.msra.mxu0 0.0
  %1046 = vmatprep.subr.mxu0 0.0
  %1047 = vmatpush2.xpose.msra.mxu0 0.0
  %1048 = vmatprep.subr.mxu0 0.0
  %1049 = vmatpush2.xpose.msra.mxu0 0.0
  %1050 = vmatprep.subr.mxu0 0.0
  %1051 = vmatpush2.xpose.msra.mxu0 0.0
  %1052 = vmatprep.subr.mxu0 0.0
  %1053 = vmatpush2.xpose.msra.mxu0 0.0
  %1054 = vmatprep.subr.mxu0 0.0
  %1055 = vmatpush2.xpose.msra.mxu0 0.0
  %1056 = vmatprep.subr.mxu0 0.0
  %1057 = vmatpush2.xpose.msra.mxu0 0.0
  %1058 = vmatprep.subr.mxu0 0.0
  %1059 = vmatpush2.xpose.msra.mxu0 0.0
  %1060 = vmatprep.mubr.f32.mxu0 0.0
  %1061 = vmatmul.mubr.f32.gmra.mxu0 %v982
  %v1062 = vpop.f32.mrf.mxu0
  %v1063 = vadd.f32 %v980, %v1062
  %v1064 = vpop.f32.mrf.mxu0
  %1065 = vdwg.mxu0
  %v1066 = vadd.f32 %v126, %v1063
  %vm1067 = vcmask 257024
  %v1068 = vsel %vm1067, %v1066, 0.0
  %1069 = vadd.xlane.f32.xlu0 %v1068
  %v1070 = vpop.xlane.xlu0 %1069
  %v1071 = vrcp.pop 32.0
  %v1072 = vmul.f32 %v1070, %v1071
  %v1073 = vsub.f32 %v1066, %v1072
  %v1074 = vmul.f32 %v1073, %v1073
  %v1075 = vsel %vm1067, %v1074, 0.0
  %1076 = vadd.xlane.f32.xlu0 %v1075
  %v1077 = vpop.xlane.xlu0 %1076
  %v1078 = vmul.f32 %v1077, %v1071
  %v1079 = vadd.f32 %v1078, 1e-05
  %v1080 = vrsqrt.pop %v1079
  %v1081 = vmul.f32 %v1073, %v1080
  %v1082 = vlaneseq
  %v1083 = vshrl.u32 %v1082, 7
  %v1084 = vsub.s32 5, %v1083
  %v1085 = vrot.slane %v30, %v1084
  %v1086 = vmul.f32 %v1081, %v1085
  %v1087 = vlaneseq
  %v1088 = vshrl.u32 %v1087, 7
  %v1089 = vsub.s32 6, %v1088
  %v1090 = vrot.slane %v30, %v1089
  %v1091 = vadd.f32 %v1086, %v1090
  %v1092 = vld [vmem:[%s4] sm:$0xff]
  %v1093 = vld [vmem:[%s4 + $0x8] sm:$0xff]
  %v1094 = vld [vmem:[%s4 + $0x10] sm:$0xff]
  %v1095 = vld [vmem:[%s4 + $0x18] sm:$0xff]
  %v1096 = vlaneseq
  %v1097 = vshrl.u32 %v1096, 7
  %v1098 = vsub.s32 7, %v1097
  %v1099 = vrot.slane %v30, %v1098
  %v1101 = vsel %vm139, %v1091, 0
  %v1104 = vsel %vm139, %v1092, 0
  %v1107 = vsel %vm139, %v1093, 0
  %v1110 = vsel %vm139, %v1094, 0
  %v1113 = vsel %vm139, %v1095, 0
  %1115 = vmatprep.subr.mxu0 0.0
  %1116 = vmatpush1.xpose.msra.mxu0 0.0
  %1117 = vmatprep.subr.mxu0 0.0
  %1118 = vmatpush1.xpose.msra.mxu0 0.0
  %1119 = vmatprep.subr.mxu0 0.0
  %1120 = vmatpush1.xpose.msra.mxu0 0.0
  %1121 = vmatprep.subr.mxu0 0.0
  %1122 = vmatpush1.xpose.msra.mxu0 0.0
  %1123 = vmatprep.subr.mxu0 0.0
  %1124 = vmatpush1.xpose.msra.mxu0 0.0
  %1125 = vmatprep.subr.mxu0 0.0
  %1126 = vmatpush1.xpose.msra.mxu0 0.0
  %1127 = vmatprep.subr.mxu0 0.0
  %1128 = vmatpush1.xpose.msra.mxu0 0.0
  %1129 = vmatprep.subr.mxu0 0.0
  %1130 = vmatpush1.xpose.msra.mxu0 0.0
  %1131 = vmatprep.subr.mxu0 0.0
  %1132 = vmatpush1.xpose.msra.mxu0 0.0
  %1133 = vmatprep.subr.mxu0 0.0
  %1134 = vmatpush1.xpose.msra.mxu0 0.0
  %1135 = vmatprep.subr.mxu0 0.0
  %1136 = vmatpush1.xpose.msra.mxu0 0.0
  %1137 = vmatprep.subr.mxu0 0.0
  %1138 = vmatpush1.xpose.msra.mxu0 0.0
  %1139 = vmatprep.subr.mxu0 0.0
  %1140 = vmatpush1.xpose.msra.mxu0 %v1113
  %1141 = vmatprep.subr.mxu0 0.0
  %1142 = vmatpush1.xpose.msra.mxu0 %v1110
  %1143 = vmatprep.subr.mxu0 0.0
  %1144 = vmatpush1.xpose.msra.mxu0 %v1107
  %1145 = vmatprep.subr.mxu0 0.0
  %1146 = vmatpush1.xpose.msra.mxu0 %v1104
  %1147 = vmatprep.subr.mxu0 0.0
  %1148 = vmatpush2.xpose.msra.mxu0 0.0
  %1149 = vmatprep.subr.mxu0 0.0
  %1150 = vmatpush2.xpose.msra.mxu0 0.0
  %1151 = vmatprep.subr.mxu0 0.0
  %1152 = vmatpush2.xpose.msra.mxu0 0.0
  %1153 = vmatprep.subr.mxu0 0.0
  %1154 = vmatpush2.xpose.msra.mxu0 0.0
  %1155 = vmatprep.subr.mxu0 0.0
  %1156 = vmatpush2.xpose.msra.mxu0 0.0
  %1157 = vmatprep.subr.mxu0 0.0
  %1158 = vmatpush2.xpose.msra.mxu0 0.0
  %1159 = vmatprep.subr.mxu0 0.0
  %1160 = vmatpush2.xpose.msra.mxu0 0.0
  %1161 = vmatprep.subr.mxu0 0.0
  %1162 = vmatpush2.xpose.msra.mxu0 0.0
  %1163 = vmatprep.subr.mxu0 0.0
  %1164 = vmatpush2.xpose.msra.mxu0 0.0
  %1165 = vmatprep.subr.mxu0 0.0
  %1166 = vmatpush2.xpose.msra.mxu0 0.0
  %1167 = vmatprep.subr.mxu0 0.0
  %1168 = vmatpush2.xpose.msra.mxu0 0.0
  %1169 = vmatprep.subr.mxu0 0.0
  %1170 = vmatpush2.xpose.msra.mxu0 0.0
  %1171 = vmatprep.subr.mxu0 0.0
  %1172 = vmatpush2.xpose.msra.mxu0 0.0
  %1173 = vmatprep.subr.mxu0 0.0
  %1174 = vmatpush2.xpose.msra.mxu0 0.0
  %1175 = vmatprep.subr.mxu0 0.0
  %1176 = vmatpush2.xpose.msra.mxu0 0.0
  %1177 = vmatprep.subr.mxu0 0.0
  %1178 = vmatpush2.xpose.msra.mxu0 0.0
  %1179 = vmatprep.mubr.f32.mxu0 0.0
  %1180 = vmatmul.mubr.f32.gmra.mxu0 %v1101
  %v1181 = vpop.f32.mrf.mxu0
  %v1182 = vadd.f32 %v1099, %v1181
  %v1183 = vpop.f32.mrf.mxu0
  %1184 = vdwg.mxu0
  %v1185 = vmax.f32 %v1182, 0.0
  %v1186 = vld [vmem:[%s5] sm:$0xff]
  %v1187 = vld [vmem:[%s5 + $0x8] sm:$0xff]
  %v1188 = vld [vmem:[%s5 + $0x10] sm:$0xff]
  %v1189 = vld [vmem:[%s5 + $0x18] sm:$0xff]
  %v1190 = vld [vmem:[%s5 + $0x20] sm:$0xff]
  %v1191 = vld [vmem:[%s5 + $0x28] sm:$0xff]
  %v1192 = vld [vmem:[%s5 + $0x30] sm:$0xff]
  %v1193 = vld [vmem:[%s5 + $0x38] sm:$0xff]
  %v1194 = vld [vmem:[%s5 + $0x40] sm:$0xff]
  %v1195 = vld [vmem:[%s5 + $0x48] sm:$0xff]
  %v1196 = vld [vmem:[%s5 + $0x50] sm:$0xff]
  %v1197 = vld [vmem:[%s5 + $0x58] sm:$0xff]
  %v1198 = vld [vmem:[%s5 + $0x60] sm:$0xff]
  %v1199 = vld [vmem:[%s5 + $0x68] sm:$0xff]
  %v1200 = vld [vmem:[%s5 + $0x70] sm:$0xff]
  %v1201 = vld [vmem:[%s5 + $0x78] sm:$0xff]
  %v1202 = vlaneseq
  %v1203 = vshrl.u32 %v1202, 7
  %v1204 = vsub.s32 0, %v1203
  %v1205 = vrot.slane %v31, %v1204
  %v1207 = vsel %vm139, %v1185, 0
  %v1210 = vsel %vm139, %v1186, 0
  %v1213 = vsel %vm139, %v1187, 0
  %v1216 = vsel %vm139, %v1188, 0
  %v1219 = vsel %vm139, %v1189, 0
  %v1222 = vsel %vm139, %v1190, 0
  %v1225 = vsel %vm139, %v1191, 0
  %v1228 = vsel %vm139, %v1192, 0
  %v1231 = vsel %vm139, %v1193, 0
  %v1234 = vsel %vm139, %v1194, 0
  %v1237 = vsel %vm139, %v1195, 0
  %v1240 = vsel %vm139, %v1196, 0
  %v1243 = vsel %vm139, %v1197, 0
  %v1246 = vsel %vm139, %v1198, 0
  %v1249 = vsel %vm139, %v1199, 0
  %v1252 = vsel %vm139, %v1200, 0
  %v1255 = vsel %vm139, %v1201, 0
  %1257 = vmatprep.subr.mxu0 0.0
  %1258 = vmatpush1.xpose.msra.mxu0 %v1255
  %1259 = vmatprep.subr.mxu0 0.0
  %1260 = vmatpush1.xpose.msra.mxu0 %v1252
  %1261 = vmatprep.subr.mxu0 0.0
  %1262 = vmatpush1.xpose.msra.mxu0 %v1249
  %1263 = vmatprep.subr.mxu0 0.0
  %1264 = vmatpush1.xpose.msra.mxu0 %v1246
  %1265 = vmatprep.subr.mxu0 0.0
  %1266 = vmatpush1.xpose.msra.mxu0 %v1243
  %1267 = vmatprep.subr.mxu0 0.0
  %1268 = vmatpush1.xpose.msra.mxu0 %v1240
  %1269 = vmatprep.subr.mxu0 0.0
  %1270 = vmatpush1.xpose.msra.mxu0 %v1237
  %1271 = vmatprep.subr.mxu0 0.0
  %1272 = vmatpush1.xpose.msra.mxu0 %v1234
  %1273 = vmatprep.subr.mxu0 0.0
  %1274 = vmatpush1.xpose.msra.mxu0 %v1231
  %1275 = vmatprep.subr.mxu0 0.0
  %1276 = vmatpush1.xpose.msra.mxu0 %v1228
  %1277 = vmatprep.subr.mxu0 0.0
  %1278 = vmatpush1.xpose.msra.mxu0 %v1225
  %1279 = vmatprep.subr.mxu0 0.0
  %1280 = vmatpush1.xpose.msra.mxu0 %v1222
  %1281 = vmatprep.subr.mxu0 0.0
  %1282 = vmatpush1.xpose.msra.mxu0 %v1219
  %1283 = vmatprep.subr.mxu0 0.0
  %1284 = vmatpush1.xpose.msra.mxu0 %v1216
  %1285 = vmatprep.subr.mxu0 0.0
  %1286 = vmatpush1.xpose.msra.mxu0 %v1213
  %1287 = vmatprep.subr.mxu0 0.0
  %1288 = vmatpush1.xpose.msra.mxu0 %v1210
  %1289 = vmatprep.subr.mxu0 0.0
  %1290 = vmatpush2.xpose.msra.mxu0 0.0
  %1291 = vmatprep.subr.mxu0 0.0
  %1292 = vmatpush2.xpose.msra.mxu0 0.0
  %1293 = vmatprep.subr.mxu0 0.0
  %1294 = vmatpush2.xpose.msra.mxu0 0.0
  %1295 = vmatprep.subr.mxu0 0.0
  %1296 = vmatpush2.xpose.msra.mxu0 0.0
  %1297 = vmatprep.subr.mxu0 0.0
  %1298 = vmatpush2.xpose.msra.mxu0 0.0
  %1299 = vmatprep.subr.mxu0 0.0
  %1300 = vmatpush2.xpose.msra.mxu0 0.0
  %1301 = vmatprep.subr.mxu0 0.0
  %1302 = vmatpush2.xpose.msra.mxu0 0.0
  %1303 = vmatprep.subr.mxu0 0.0
  %1304 = vmatpush2.xpose.msra.mxu0 0.0
  %1305 = vmatprep.subr.mxu0 0.0
  %1306 = vmatpush2.xpose.msra.mxu0 0.0
  %1307 = vmatprep.subr.mxu0 0.0
  %1308 = vmatpush2.xpose.msra.mxu0 0.0
  %1309 = vmatprep.subr.mxu0 0.0
  %1310 = vmatpush2.xpose.msra.mxu0 0.0
  %1311 = vmatprep.subr.mxu0 0.0
  %1312 = vmatpush2.xpose.msra.mxu0 0.0
  %1313 = vmatprep.subr.mxu0 0.0
  %1314 = vmatpush2.xpose.msra.mxu0 0.0
  %1315 = vmatprep.subr.mxu0 0.0
  %1316 = vmatpush2.xpose.msra.mxu0 0.0
  %1317 = vmatprep.subr.mxu0 0.0
  %1318 = vmatpush2.xpose.msra.mxu0 0.0
  %1319 = vmatprep.subr.mxu0 0.0
  %1320 = vmatpush2.xpose.msra.mxu0 0.0
  %1321 = vmatprep.mubr.f32.mxu0 0.0
  %1322 = vmatmul.mubr.f32.gmra.mxu0 %v1207
  %v1323 = vpop.f32.mrf.mxu0
  %v1324 = vadd.f32 %v1205, %v1323
  %v1325 = vpop.f32.mrf.mxu0
  %1326 = vdwg.mxu0
  %v1327 = vxor.u32 %v1324, 2147483648
  %v1328 = vmul.f32 %v1327, 1.442695
  %v1329 = vpow.pop %v1328
  %v1330 = vadd.f32 %v1329, 1.0
  %v1331 = vrcp.pop %v1330
  %v1332 = vmul.f32 1.0, %v1331
  %v1333 = vlaneseq
  %v1334 = vshrl.u32 %v1333, 7
  %v1335 = vsub.s32 1, %v1334
  %v1336 = vrot.slane %v31, %v1335
  %v1337 = vmul.f32 %v1332, %v1336
  %1338 = vst [vmem:[%s8] sm:$0xf] %v1337
  // Predicated region
  $region34: #{simplified_causal_discovery_forward.1} parent=0 // pred_check
    _
  $region35: #{simplified_causal_discovery_forward.1} parent=0 // pred_check_branch
    %1340 = sbr.rel (0) target = $region37
  $region36: #{simplified_causal_discovery_forward.1} parent=0 // pred_region
    _
  $region37: #{simplified_causal_discovery_forward.1} parent=0 // pred_fallthru
    _
  // Predicated region
  $region38: #{simplified_causal_discovery_forward.1} parent=0 // pred_check
    _
  $region39: #{simplified_causal_discovery_forward.1} parent=0 // pred_check_branch
    %1342 = sbr.rel (0) target = $region41
  $region40: #{simplified_causal_discovery_forward.1} parent=0 // pred_region
    _
  $region41: #{simplified_causal_discovery_forward.1} parent=0 // pred_fallthru
    _

</llo_original>
